<compile_context>
chip_gen: v7x
topology: tpu7x:2x2x1
jax: 0.10.0
libtpu: 0.0.40
codegen_flags: <defaults>
</compile_context>

<pallas_src>
import functools

import jax
import jax.numpy as jnp
from jax.experimental import pallas as pl
from jax.experimental.pallas import tpu as pltpu


def get_padding(k, d):
    # same helper as the PyTorch module
    return (k * d - d) // 2


def _round_up(a, b):
    return (a + b - 1) // b * b


def _tpu_config():
    """Per-generation knobs: time-tile target, scoped VMEM limit, residency dtype."""
    kind = ""
    try:
        kind = jax.devices()[0].device_kind.lower()
    except Exception:
        pass
    if "v7" in kind:          # 64 MiB VMEM / TC, 2 TCs, bf16 VPU
        cfg = dict(t_tile=512, vmem_bytes=56 * 2**20, res_dtype=jnp.bfloat16)
    elif "v6" in kind:        # 128 MiB VMEM, bf16 VPU
        cfg = dict(t_tile=2048, vmem_bytes=100 * 2**20, res_dtype=jnp.bfloat16)
    elif "v5" in kind or "v4" in kind:   # no bf16 VPU path -> f32 elementwise
        cfg = dict(t_tile=2048, vmem_bytes=100 * 2**20, res_dtype=jnp.float32)
    else:                     # unknown -> conservative
        cfg = dict(t_tile=1024, vmem_bytes=48 * 2**20, res_dtype=jnp.float32)
    try:
        cap = pltpu.get_tpu_info().vmem_capacity_bytes
        cfg["vmem_bytes"] = min(cfg["vmem_bytes"], int(cap * 0.85))
    except Exception:
        pass
    return cfg


def _make_resblock_kernel(k, D, C, T, t_tile, halo_pad, res_dtype, mxu_dtype):
    """Fused kernel: every (LeakyReLU(0.1) -> dilated conv) layer + residual adds
    computed on one halo'd time tile that stays resident in VMEM."""
    n_layers = sum(len(row) for row in D)
    halo = sum(get_padding(k, d) for row in D for d in row)
    w_ext = t_tile + 2 * halo_pad

    def kernel(*refs):
        xa_ref, xb_ref = refs[0], refs[1]
        wb_refs = refs[2:2 + 2 * n_layers]
        o_ref = refs[2 + 2 * n_layers]

        t_id = pl.program_id(1)
        # original-time position of column 0 of the (unshrunk) window
        base = t_id * t_tile - halo_pad
        col = jax.lax.broadcasted_iota(jnp.int32, (1, w_ext), 1)

        # Assemble the halo'd window from the two lane-aligned pieces.
        h = jnp.concatenate([xa_ref[...], xb_ref[...]], axis=-1).astype(res_dtype)

        cum = 0            # cumulative halo consumed so far (static python int)
        layer = 0
        for row in D:                              # outer cycle (static)
            res, res_cum = h, cum
            for d in row:                          # inner cycle (static)
                w_ref = wb_refs[2 * layer]         # (k, C, C)  bf16 (tap, out, in)
                b_ref = wb_refs[2 * layer + 1]     # (C, 1)     f32
                layer += 1
                pad_l = get_padding(k, d)
                w_in = w_ext - 2 * cum
                w_out = w_in - 2 * pad_l

                act = jnp.where(h >= 0, h, 0.1 * h)       # LeakyReLU(0.1)

                # k accumulating MXU matmuls over statically shifted slices
                # (no rolls, no per-tap masks, no (k*C, T) materialization).
                acc = None
                for tap in range(k):
                    sl = act[:, tap * d: tap * d + w_out].astype(mxu_dtype)
                    part = jnp.dot(w_ref[tap], sl,
                                   preferred_element_type=jnp.float32)
                    acc = part if acc is None else acc + part
                cum += pad_l
                hf = acc + b_ref[...]                      # f32 bias add

                # Exact conv zero-padding semantics at the sequence boundaries:
                # zero every position outside [0, T).  The (1, w_out) mask is
                # all-true on interior tiles (edge tiles only pay the select).
                pos = base + cum + col[:, :w_out]
                valid = (pos >= 0) & (pos < T)
                h = jnp.where(valid, hf, 0.0).astype(res_dtype)

            # fused residual add of this outer cycle (aligned by the shrink delta)
            w_cur = w_ext - 2 * cum
            delta = cum - res_cum
            h = h + res[:, delta: delta + w_cur]

        # store only the tile interior (lane-dense, t_tile is a multiple of 128)
        off = halo_pad - halo
        o_ref[...] = h[:, off: off + t_tile].astype(o_ref.dtype)

    return kernel


def res_block_forward(x, params, k, D, *, t_tile=None, res_dtype=None,
                      mxu_dtype=jnp.bfloat16, vmem_limit_bytes=None):
    """Pallas implementation of ResBlock.forward.  x: (B, C, T) in NCW layout."""
    B, C, T = x.shape
    assert k % 2 == 1, "odd kernel size required for 'same' padding semantics"

    cfg = _tpu_config()
    if res_dtype is None:
        res_dtype = cfg["res_dtype"]
    if vmem_limit_bytes is None:
        vmem_limit_bytes = cfg["vmem_bytes"]
    if t_tile is None:
        t_tile = cfg["t_tile"]

    pads = [get_padding(k, d) for row in D for d in row]
    halo = sum(pads)
    halo_pad = _round_up(max(halo, 1), 64)   # keeps the window lane-aligned
    quantum = 2 * halo_pad                   # multiple of 128

    # tile size: multiple of `quantum`, clamped to the (rounded-up) sequence
    t_tile = max(quantum, (t_tile // quantum) * quantum)
    t_tile = min(t_tile, _round_up(T, quantum))
    t_pad = _round_up(T, t_tile)
    n_t = t_pad // t_tile

    io_dtype = res_dtype if res_dtype == jnp.bfloat16 else x.dtype
    # zero-pad time by the halo (== the conv zero padding) and up to n_t * t_tile
    x_pad = jnp.pad(x.astype(io_dtype),
                    ((0, 0), (0, 0), (halo_pad, halo_pad + (t_pad - T))))

    flat_inputs = [x_pad, x_pad]
    in_specs = [
        # main t_tile piece of the halo'd window: padded cols [t*t_tile, (t+1)*t_tile)
        pl.BlockSpec((None, C, t_tile), lambda b, t: (b, 0, t)),
        # trailing 2*halo_pad piece: padded cols [(t+1)*t_tile, (t+1)*t_tile + quantum)
        pl.BlockSpec((None, C, quantum),
                     lambda b, t: (b, 0, (t + 1) * (t_tile // quantum))),
    ]

    # Grid-invariant weights/biases: single-buffered (no double-buffer duplication).
    weight_mode = pl.Buffered(1)
    for row_p in params:
        for (w, b) in row_p:                         # w: (k, C, C), b: (C,)
            flat_inputs.append(w.astype(mxu_dtype))
            in_specs.append(pl.BlockSpec((k, C, C), lambda b_, t_: (0, 0, 0),
                                         pipeline_mode=weight_mode))
            flat_inputs.append(b.reshape(C, 1).astype(jnp.float32))
            in_specs.append(pl.BlockSpec((C, 1), lambda b_, t_: (0, 0),
                                         pipeline_mode=weight_mode))

    kernel = _make_resblock_kernel(k, D, C, T, t_tile, halo_pad,
                                   res_dtype, mxu_dtype)

    out = pl.pallas_call(
        kernel,
        out_shape=jax.ShapeDtypeStruct((B, C, t_pad), x.dtype),
        grid=(B, n_t),
        in_specs=in_specs,
        out_specs=pl.BlockSpec((None, C, t_tile), lambda b, t: (b, 0, t)),
        compiler_params=pltpu.CompilerParams(
            dimension_semantics=("parallel", "parallel"),
            vmem_limit_bytes=vmem_limit_bytes,
        ),
    )(*flat_inputs)

    if t_pad != T:
        out = out[:, :, :T]
    return out


# ----------------------- pure-JAX reference (for checking) -----------------------
def res_block_reference(x, params, k, D):
    def lrelu(v):
        return jnp.where(v >= 0, v, 0.1 * v)

    for i, dil_row in enumerate(D):
        h = x
        for j, d in enumerate(dil_row):
            w, b = params[i][j]                       # w: (k, C_out, C_in)
            h = lrelu(h)
            pad = get_padding(k, d)
            w_oik = jnp.transpose(w, (1, 2, 0))       # (C_out, C_in, k)
            h = jax.lax.conv_general_dilated(
                h, w_oik, window_strides=(1,), padding=[(pad, pad)],
                rhs_dilation=(d,), dimension_numbers=("NCH", "OIH", "NCH"),
            ) + b[None, :, None]
        x = x + h
    return x


def init_params(key, channels, k, D):
    """Deterministic PyTorch-style uniform(-1/sqrt(fan_in), +1/sqrt(fan_in)) init."""
    fan_in = channels * k
    bound = 1.0 / jnp.sqrt(jnp.float32(fan_in))
    params = []
    for row in D:
        row_params = []
        for _ in row:
            key, kw, kb = jax.random.split(key, 3)
            w = jax.random.uniform(kw, (k, channels, channels), jnp.float32, -bound, bound)
            b = jax.random.uniform(kb, (channels,), jnp.float32, -bound, bound)
            row_params.append((w, b))
        params.append(row_params)
    return params


if __name__ == "__main__":
    key = jax.random.PRNGKey(0)

    configs = [
        # (B, C, T,   k, D,              t_tile)  -> multi-tile: halo + edge masks
        (2, 8, 256, 3, [[1, 3], [5, 1]], 128),
        # T not a multiple of the tile, larger k/dilation halo
        (1, 16, 200, 5, [[1, 2], [4, 1]], 128),
    ]
    for (B, C, T, k, D, tt) in configs:
        key, kx, kp = jax.random.split(key, 3)
        x = jax.random.normal(kx, (B, C, T), dtype=jnp.float32)
        params = init_params(kp, C, k, D)

        ref = res_block_reference(x, params, k, D)

        # explicit small tile -> exercises the halo'd multi-tile path
        fwd = jax.jit(functools.partial(res_block_forward, k=k, D=D, t_tile=tt))
        out = jax.block_until_ready(fwd(x, params))
        assert out.shape == (B, C, T)
        # bf16 MXU operands (+ bf16 residency on v6e/v7x) vs f32 reference
        assert jnp.allclose(out, ref, atol=5e-2, rtol=5e-2), "mismatch vs reference"

        # per-generation auto tile selection path
        fwd_auto = jax.jit(functools.partial(res_block_forward, k=k, D=D))
        out2 = jax.block_until_ready(fwd_auto(x, params))
        assert jnp.allclose(out2, ref, atol=5e-2, rtol=5e-2), "mismatch vs reference"

    print("KERNEL_OK")
</pallas_src>

<mosaic_0001>
module attributes {stable_mosaic.version = 11 : i64} {
  func.func @kernel(%arg0: i32, %arg1: i32, %arg2: memref<1x8x128xf32, #tpu.memory_space<vmem>>, %arg3: memref<1x8x128xf32, #tpu.memory_space<vmem>>, %arg4: memref<3x8x8xbf16, #tpu.memory_space<vmem>>, %arg5: memref<8x1xf32, #tpu.memory_space<vmem>>, %arg6: memref<3x8x8xbf16, #tpu.memory_space<vmem>>, %arg7: memref<8x1xf32, #tpu.memory_space<vmem>>, %arg8: memref<3x8x8xbf16, #tpu.memory_space<vmem>>, %arg9: memref<8x1xf32, #tpu.memory_space<vmem>>, %arg10: memref<3x8x8xbf16, #tpu.memory_space<vmem>>, %arg11: memref<8x1xf32, #tpu.memory_space<vmem>>, %arg12: memref<1x8x128xf32, #tpu.memory_space<vmem>>) attributes {dimension_semantics = [#tpu.dimension_semantics<parallel>, #tpu.dimension_semantics<parallel>], iteration_bounds = array<i64: 2, 2>, scalar_prefetch = 0 : i64, scratch_operands = 0 : i64, tpu.core_type = #tpu.core_type<tc>, window_params = [{transform_indices = @transform_0, window_bounds = array<i64: 1, 8, 128>}, {transform_indices = @transform_1, window_bounds = array<i64: 1, 8, 128>}, {pipeline_mode = #tpu.pipeline_mode<synchronous>, transform_indices = @transform_2, window_bounds = array<i64: 3, 8, 8>}, {pipeline_mode = #tpu.pipeline_mode<synchronous>, transform_indices = @transform_3, window_bounds = array<i64: 8, 1>}, {pipeline_mode = #tpu.pipeline_mode<synchronous>, transform_indices = @transform_4, window_bounds = array<i64: 3, 8, 8>}, {pipeline_mode = #tpu.pipeline_mode<synchronous>, transform_indices = @transform_5, window_bounds = array<i64: 8, 1>}, {pipeline_mode = #tpu.pipeline_mode<synchronous>, transform_indices = @transform_6, window_bounds = array<i64: 3, 8, 8>}, {pipeline_mode = #tpu.pipeline_mode<synchronous>, transform_indices = @transform_7, window_bounds = array<i64: 8, 1>}, {pipeline_mode = #tpu.pipeline_mode<synchronous>, transform_indices = @transform_8, window_bounds = array<i64: 3, 8, 8>}, {pipeline_mode = #tpu.pipeline_mode<synchronous>, transform_indices = @transform_9, window_bounds = array<i64: 8, 1>}, {transform_indices = @transform_10, window_bounds = array<i64: 1, 8, 128>}]} {
    %c128_i32 = arith.constant 128 : i32
    %0 = arith.muli %arg1, %c128_i32 : i32
    %c64_i32 = arith.constant 64 : i32
    %1 = arith.subi %0, %c64_i32 : i32
    %2 = tpu.iota {dimensions = array<i32: 1>} : vector<1x256xi32>
    %c0 = arith.constant 0 : index
    %c0_0 = arith.constant 0 : index
    %c0_1 = arith.constant 0 : index
    %3 = vector.load %arg2[%c0, %c0_0, %c0_1] : memref<1x8x128xf32, #tpu.memory_space<vmem>>, vector<1x8x128xf32>
    %4 = vector.shape_cast %3 : vector<1x8x128xf32> to vector<8x128xf32>
    %c0_2 = arith.constant 0 : index
    %c0_3 = arith.constant 0 : index
    %c0_4 = arith.constant 0 : index
    %5 = vector.load %arg3[%c0_2, %c0_3, %c0_4] : memref<1x8x128xf32, #tpu.memory_space<vmem>>, vector<1x8x128xf32>
    %6 = vector.shape_cast %5 : vector<1x8x128xf32> to vector<8x128xf32>
    %7 = tpu.concatenate %4, %6 in 1 : vector<8x128xf32>, vector<8x128xf32> -> vector<8x256xf32>
    %cst = arith.constant 0.000000e+00 : f32
    %8 = vector.broadcast %cst : f32 to vector<8x256xf32>
    %9 = arith.cmpf oge, %7, %8 : vector<8x256xf32>
    %cst_5 = arith.constant 1.000000e-01 : f32
    %10 = vector.broadcast %cst_5 : f32 to vector<8x256xf32>
    %11 = arith.mulf %10, %7 : vector<8x256xf32>
    %12 = arith.select %9, %7, %11 : vector<8x256xi1>, vector<8x256xf32>
    %13 = vector.extract_strided_slice %12 {offsets = [0, 0], sizes = [8, 254], strides = [1, 1]} : vector<8x256xf32> to vector<8x254xf32>
    %14 = arith.truncf %13 : vector<8x254xf32> to vector<8x254xbf16>
    %c0_6 = arith.constant 0 : index
    %c0_7 = arith.constant 0 : index
    %c0_8 = arith.constant 0 : index
    %15 = vector.load %arg4[%c0_6, %c0_7, %c0_8] : memref<3x8x8xbf16, #tpu.memory_space<vmem>>, vector<1x8x8xbf16>
    %16 = vector.shape_cast %15 : vector<1x8x8xbf16> to vector<8x8xbf16>
    %cst_9 = arith.constant dense<0.000000e+00> : vector<8x254xf32>
    %17 = tpu.matmul %16, %14, %cst_9 {dimension_numbers = #tpu.dot_dimension_numbers<[1], [0], [0], [1], [0, 0, 1, 1], [], []>} : vector<8x8xbf16>, vector<8x254xbf16>, vector<8x254xf32> -> vector<8x254xf32>
    %18 = vector.extract_strided_slice %12 {offsets = [0, 1], sizes = [8, 254], strides = [1, 1]} : vector<8x256xf32> to vector<8x254xf32>
    %19 = arith.truncf %18 : vector<8x254xf32> to vector<8x254xbf16>
    %c1 = arith.constant 1 : index
    %c0_10 = arith.constant 0 : index
    %c0_11 = arith.constant 0 : index
    %20 = vector.load %arg4[%c1, %c0_10, %c0_11] : memref<3x8x8xbf16, #tpu.memory_space<vmem>>, vector<1x8x8xbf16>
    %21 = vector.shape_cast %20 : vector<1x8x8xbf16> to vector<8x8xbf16>
    %cst_12 = arith.constant dense<0.000000e+00> : vector<8x254xf32>
    %22 = tpu.matmul %21, %19, %cst_12 {dimension_numbers = #tpu.dot_dimension_numbers<[1], [0], [0], [1], [0, 0, 1, 1], [], []>} : vector<8x8xbf16>, vector<8x254xbf16>, vector<8x254xf32> -> vector<8x254xf32>
    %23 = arith.addf %17, %22 : vector<8x254xf32>
    %24 = vector.extract_strided_slice %12 {offsets = [0, 2], sizes = [8, 254], strides = [1, 1]} : vector<8x256xf32> to vector<8x254xf32>
    %25 = arith.truncf %24 : vector<8x254xf32> to vector<8x254xbf16>
    %c2 = arith.constant 2 : index
    %c0_13 = arith.constant 0 : index
    %c0_14 = arith.constant 0 : index
    %26 = vector.load %arg4[%c2, %c0_13, %c0_14] : memref<3x8x8xbf16, #tpu.memory_space<vmem>>, vector<1x8x8xbf16>
    %27 = vector.shape_cast %26 : vector<1x8x8xbf16> to vector<8x8xbf16>
    %cst_15 = arith.constant dense<0.000000e+00> : vector<8x254xf32>
    %28 = tpu.matmul %27, %25, %cst_15 {dimension_numbers = #tpu.dot_dimension_numbers<[1], [0], [0], [1], [0, 0, 1, 1], [], []>} : vector<8x8xbf16>, vector<8x254xbf16>, vector<8x254xf32> -> vector<8x254xf32>
    %29 = arith.addf %23, %28 : vector<8x254xf32>
    %c0_16 = arith.constant 0 : index
    %c0_17 = arith.constant 0 : index
    %30 = vector.load %arg5[%c0_16, %c0_17] : memref<8x1xf32, #tpu.memory_space<vmem>>, vector<8x1xf32>
    %31 = vector.broadcast %30 : vector<8x1xf32> to vector<8x254xf32>
    %32 = arith.addf %29, %31 : vector<8x254xf32>
    %c1_i32 = arith.constant 1 : i32
    %33 = arith.addi %1, %c1_i32 : i32
    %34 = vector.extract_strided_slice %2 {offsets = [0, 0], sizes = [1, 254], strides = [1, 1]} : vector<1x256xi32> to vector<1x254xi32>
    %35 = vector.broadcast %33 : i32 to vector<1x254xi32>
    %36 = arith.addi %35, %34 : vector<1x254xi32>
    %c0_i32 = arith.constant 0 : i32
    %37 = vector.broadcast %c0_i32 : i32 to vector<1x254xi32>
    %38 = arith.cmpi sge, %36, %37 : vector<1x254xi32>
    %c256_i32 = arith.constant 256 : i32
    %39 = vector.broadcast %c256_i32 : i32 to vector<1x254xi32>
    %40 = arith.cmpi slt, %36, %39 : vector<1x254xi32>
    %41 = arith.andi %38, %40 : vector<1x254xi1>
    %cst_18 = arith.constant 0.000000e+00 : f32
    %42 = vector.shape_cast %41 : vector<1x254xi1> to vector<1x254xi1>
    %43 = vector.broadcast %42 : vector<1x254xi1> to vector<8x254xi1>
    %44 = vector.broadcast %cst_18 : f32 to vector<8x254xf32>
    %45 = arith.select %43, %32, %44 : vector<8x254xi1>, vector<8x254xf32>
    %cst_19 = arith.constant 0.000000e+00 : f32
    %46 = vector.broadcast %cst_19 : f32 to vector<8x254xf32>
    %47 = arith.cmpf oge, %45, %46 : vector<8x254xf32>
    %cst_20 = arith.constant 1.000000e-01 : f32
    %48 = vector.broadcast %cst_20 : f32 to vector<8x254xf32>
    %49 = arith.mulf %48, %45 : vector<8x254xf32>
    %50 = arith.select %47, %45, %49 : vector<8x254xi1>, vector<8x254xf32>
    %51 = vector.extract_strided_slice %50 {offsets = [0, 0], sizes = [8, 248], strides = [1, 1]} : vector<8x254xf32> to vector<8x248xf32>
    %52 = arith.truncf %51 : vector<8x248xf32> to vector<8x248xbf16>
    %c0_21 = arith.constant 0 : index
    %c0_22 = arith.constant 0 : index
    %c0_23 = arith.constant 0 : index
    %53 = vector.load %arg6[%c0_21, %c0_22, %c0_23] : memref<3x8x8xbf16, #tpu.memory_space<vmem>>, vector<1x8x8xbf16>
    %54 = vector.shape_cast %53 : vector<1x8x8xbf16> to vector<8x8xbf16>
    %cst_24 = arith.constant dense<0.000000e+00> : vector<8x248xf32>
    %55 = tpu.matmul %54, %52, %cst_24 {dimension_numbers = #tpu.dot_dimension_numbers<[1], [0], [0], [1], [0, 0, 1, 1], [], []>} : vector<8x8xbf16>, vector<8x248xbf16>, vector<8x248xf32> -> vector<8x248xf32>
    %56 = vector.extract_strided_slice %50 {offsets = [0, 3], sizes = [8, 248], strides = [1, 1]} : vector<8x254xf32> to vector<8x248xf32>
    %57 = arith.truncf %56 : vector<8x248xf32> to vector<8x248xbf16>
    %c1_25 = arith.constant 1 : index
    %c0_26 = arith.constant 0 : index
    %c0_27 = arith.constant 0 : index
    %58 = vector.load %arg6[%c1_25, %c0_26, %c0_27] : memref<3x8x8xbf16, #tpu.memory_space<vmem>>, vector<1x8x8xbf16>
    %59 = vector.shape_cast %58 : vector<1x8x8xbf16> to vector<8x8xbf16>
    %cst_28 = arith.constant dense<0.000000e+00> : vector<8x248xf32>
    %60 = tpu.matmul %59, %57, %cst_28 {dimension_numbers = #tpu.dot_dimension_numbers<[1], [0], [0], [1], [0, 0, 1, 1], [], []>} : vector<8x8xbf16>, vector<8x248xbf16>, vector<8x248xf32> -> vector<8x248xf32>
    %61 = arith.addf %55, %60 : vector<8x248xf32>
    %62 = vector.extract_strided_slice %50 {offsets = [0, 6], sizes = [8, 248], strides = [1, 1]} : vector<8x254xf32> to vector<8x248xf32>
    %63 = arith.truncf %62 : vector<8x248xf32> to vector<8x248xbf16>
    %c2_29 = arith.constant 2 : index
    %c0_30 = arith.constant 0 : index
    %c0_31 = arith.constant 0 : index
    %64 = vector.load %arg6[%c2_29, %c0_30, %c0_31] : memref<3x8x8xbf16, #tpu.memory_space<vmem>>, vector<1x8x8xbf16>
    %65 = vector.shape_cast %64 : vector<1x8x8xbf16> to vector<8x8xbf16>
    %cst_32 = arith.constant dense<0.000000e+00> : vector<8x248xf32>
    %66 = tpu.matmul %65, %63, %cst_32 {dimension_numbers = #tpu.dot_dimension_numbers<[1], [0], [0], [1], [0, 0, 1, 1], [], []>} : vector<8x8xbf16>, vector<8x248xbf16>, vector<8x248xf32> -> vector<8x248xf32>
    %67 = arith.addf %61, %66 : vector<8x248xf32>
    %c0_33 = arith.constant 0 : index
    %c0_34 = arith.constant 0 : index
    %68 = vector.load %arg7[%c0_33, %c0_34] : memref<8x1xf32, #tpu.memory_space<vmem>>, vector<8x1xf32>
    %69 = vector.broadcast %68 : vector<8x1xf32> to vector<8x248xf32>
    %70 = arith.addf %67, %69 : vector<8x248xf32>
    %c4_i32 = arith.constant 4 : i32
    %71 = arith.addi %1, %c4_i32 : i32
    %72 = vector.extract_strided_slice %2 {offsets = [0, 0], sizes = [1, 248], strides = [1, 1]} : vector<1x256xi32> to vector<1x248xi32>
    %73 = vector.broadcast %71 : i32 to vector<1x248xi32>
    %74 = arith.addi %73, %72 : vector<1x248xi32>
    %c0_i32_35 = arith.constant 0 : i32
    %75 = vector.broadcast %c0_i32_35 : i32 to vector<1x248xi32>
    %76 = arith.cmpi sge, %74, %75 : vector<1x248xi32>
    %c256_i32_36 = arith.constant 256 : i32
    %77 = vector.broadcast %c256_i32_36 : i32 to vector<1x248xi32>
    %78 = arith.cmpi slt, %74, %77 : vector<1x248xi32>
    %79 = arith.andi %76, %78 : vector<1x248xi1>
    %cst_37 = arith.constant 0.000000e+00 : f32
    %80 = vector.shape_cast %79 : vector<1x248xi1> to vector<1x248xi1>
    %81 = vector.broadcast %80 : vector<1x248xi1> to vector<8x248xi1>
    %82 = vector.broadcast %cst_37 : f32 to vector<8x248xf32>
    %83 = arith.select %81, %70, %82 : vector<8x248xi1>, vector<8x248xf32>
    %84 = vector.extract_strided_slice %7 {offsets = [0, 4], sizes = [8, 248], strides = [1, 1]} : vector<8x256xf32> to vector<8x248xf32>
    %85 = arith.addf %83, %84 : vector<8x248xf32>
    %cst_38 = arith.constant 0.000000e+00 : f32
    %86 = vector.broadcast %cst_38 : f32 to vector<8x248xf32>
    %87 = arith.cmpf oge, %85, %86 : vector<8x248xf32>
    %cst_39 = arith.constant 1.000000e-01 : f32
    %88 = vector.broadcast %cst_39 : f32 to vector<8x248xf32>
    %89 = arith.mulf %88, %85 : vector<8x248xf32>
    %90 = arith.select %87, %85, %89 : vector<8x248xi1>, vector<8x248xf32>
    %91 = vector.extract_strided_slice %90 {offsets = [0, 0], sizes = [8, 238], strides = [1, 1]} : vector<8x248xf32> to vector<8x238xf32>
    %92 = arith.truncf %91 : vector<8x238xf32> to vector<8x238xbf16>
    %c0_40 = arith.constant 0 : index
    %c0_41 = arith.constant 0 : index
    %c0_42 = arith.constant 0 : index
    %93 = vector.load %arg8[%c0_40, %c0_41, %c0_42] : memref<3x8x8xbf16, #tpu.memory_space<vmem>>, vector<1x8x8xbf16>
    %94 = vector.shape_cast %93 : vector<1x8x8xbf16> to vector<8x8xbf16>
    %cst_43 = arith.constant dense<0.000000e+00> : vector<8x238xf32>
    %95 = tpu.matmul %94, %92, %cst_43 {dimension_numbers = #tpu.dot_dimension_numbers<[1], [0], [0], [1], [0, 0, 1, 1], [], []>} : vector<8x8xbf16>, vector<8x238xbf16>, vector<8x238xf32> -> vector<8x238xf32>
    %96 = vector.extract_strided_slice %90 {offsets = [0, 5], sizes = [8, 238], strides = [1, 1]} : vector<8x248xf32> to vector<8x238xf32>
    %97 = arith.truncf %96 : vector<8x238xf32> to vector<8x238xbf16>
    %c1_44 = arith.constant 1 : index
    %c0_45 = arith.constant 0 : index
    %c0_46 = arith.constant 0 : index
    %98 = vector.load %arg8[%c1_44, %c0_45, %c0_46] : memref<3x8x8xbf16, #tpu.memory_space<vmem>>, vector<1x8x8xbf16>
    %99 = vector.shape_cast %98 : vector<1x8x8xbf16> to vector<8x8xbf16>
    %cst_47 = arith.constant dense<0.000000e+00> : vector<8x238xf32>
    %100 = tpu.matmul %99, %97, %cst_47 {dimension_numbers = #tpu.dot_dimension_numbers<[1], [0], [0], [1], [0, 0, 1, 1], [], []>} : vector<8x8xbf16>, vector<8x238xbf16>, vector<8x238xf32> -> vector<8x238xf32>
    %101 = arith.addf %95, %100 : vector<8x238xf32>
    %102 = vector.extract_strided_slice %90 {offsets = [0, 10], sizes = [8, 238], strides = [1, 1]} : vector<8x248xf32> to vector<8x238xf32>
    %103 = arith.truncf %102 : vector<8x238xf32> to vector<8x238xbf16>
    %c2_48 = arith.constant 2 : index
    %c0_49 = arith.constant 0 : index
    %c0_50 = arith.constant 0 : index
    %104 = vector.load %arg8[%c2_48, %c0_49, %c0_50] : memref<3x8x8xbf16, #tpu.memory_space<vmem>>, vector<1x8x8xbf16>
    %105 = vector.shape_cast %104 : vector<1x8x8xbf16> to vector<8x8xbf16>
    %cst_51 = arith.constant dense<0.000000e+00> : vector<8x238xf32>
    %106 = tpu.matmul %105, %103, %cst_51 {dimension_numbers = #tpu.dot_dimension_numbers<[1], [0], [0], [1], [0, 0, 1, 1], [], []>} : vector<8x8xbf16>, vector<8x238xbf16>, vector<8x238xf32> -> vector<8x238xf32>
    %107 = arith.addf %101, %106 : vector<8x238xf32>
    %c0_52 = arith.constant 0 : index
    %c0_53 = arith.constant 0 : index
    %108 = vector.load %arg9[%c0_52, %c0_53] : memref<8x1xf32, #tpu.memory_space<vmem>>, vector<8x1xf32>
    %109 = vector.broadcast %108 : vector<8x1xf32> to vector<8x238xf32>
    %110 = arith.addf %107, %109 : vector<8x238xf32>
    %c9_i32 = arith.constant 9 : i32
    %111 = arith.addi %1, %c9_i32 : i32
    %112 = vector.extract_strided_slice %2 {offsets = [0, 0], sizes = [1, 238], strides = [1, 1]} : vector<1x256xi32> to vector<1x238xi32>
    %113 = vector.broadcast %111 : i32 to vector<1x238xi32>
    %114 = arith.addi %113, %112 : vector<1x238xi32>
    %c0_i32_54 = arith.constant 0 : i32
    %115 = vector.broadcast %c0_i32_54 : i32 to vector<1x238xi32>
    %116 = arith.cmpi sge, %114, %115 : vector<1x238xi32>
    %c256_i32_55 = arith.constant 256 : i32
    %117 = vector.broadcast %c256_i32_55 : i32 to vector<1x238xi32>
    %118 = arith.cmpi slt, %114, %117 : vector<1x238xi32>
    %119 = arith.andi %116, %118 : vector<1x238xi1>
    %cst_56 = arith.constant 0.000000e+00 : f32
    %120 = vector.shape_cast %119 : vector<1x238xi1> to vector<1x238xi1>
    %121 = vector.broadcast %120 : vector<1x238xi1> to vector<8x238xi1>
    %122 = vector.broadcast %cst_56 : f32 to vector<8x238xf32>
    %123 = arith.select %121, %110, %122 : vector<8x238xi1>, vector<8x238xf32>
    %cst_57 = arith.constant 0.000000e+00 : f32
    %124 = vector.broadcast %cst_57 : f32 to vector<8x238xf32>
    %125 = arith.cmpf oge, %123, %124 : vector<8x238xf32>
    %cst_58 = arith.constant 1.000000e-01 : f32
    %126 = vector.broadcast %cst_58 : f32 to vector<8x238xf32>
    %127 = arith.mulf %126, %123 : vector<8x238xf32>
    %128 = arith.select %125, %123, %127 : vector<8x238xi1>, vector<8x238xf32>
    %129 = vector.extract_strided_slice %128 {offsets = [0, 0], sizes = [8, 236], strides = [1, 1]} : vector<8x238xf32> to vector<8x236xf32>
    %130 = arith.truncf %129 : vector<8x236xf32> to vector<8x236xbf16>
    %c0_59 = arith.constant 0 : index
    %c0_60 = arith.constant 0 : index
    %c0_61 = arith.constant 0 : index
    %131 = vector.load %arg10[%c0_59, %c0_60, %c0_61] : memref<3x8x8xbf16, #tpu.memory_space<vmem>>, vector<1x8x8xbf16>
    %132 = vector.shape_cast %131 : vector<1x8x8xbf16> to vector<8x8xbf16>
    %cst_62 = arith.constant dense<0.000000e+00> : vector<8x236xf32>
    %133 = tpu.matmul %132, %130, %cst_62 {dimension_numbers = #tpu.dot_dimension_numbers<[1], [0], [0], [1], [0, 0, 1, 1], [], []>} : vector<8x8xbf16>, vector<8x236xbf16>, vector<8x236xf32> -> vector<8x236xf32>
    %134 = vector.extract_strided_slice %128 {offsets = [0, 1], sizes = [8, 236], strides = [1, 1]} : vector<8x238xf32> to vector<8x236xf32>
    %135 = arith.truncf %134 : vector<8x236xf32> to vector<8x236xbf16>
    %c1_63 = arith.constant 1 : index
    %c0_64 = arith.constant 0 : index
    %c0_65 = arith.constant 0 : index
    %136 = vector.load %arg10[%c1_63, %c0_64, %c0_65] : memref<3x8x8xbf16, #tpu.memory_space<vmem>>, vector<1x8x8xbf16>
    %137 = vector.shape_cast %136 : vector<1x8x8xbf16> to vector<8x8xbf16>
    %cst_66 = arith.constant dense<0.000000e+00> : vector<8x236xf32>
    %138 = tpu.matmul %137, %135, %cst_66 {dimension_numbers = #tpu.dot_dimension_numbers<[1], [0], [0], [1], [0, 0, 1, 1], [], []>} : vector<8x8xbf16>, vector<8x236xbf16>, vector<8x236xf32> -> vector<8x236xf32>
    %139 = arith.addf %133, %138 : vector<8x236xf32>
    %140 = vector.extract_strided_slice %128 {offsets = [0, 2], sizes = [8, 236], strides = [1, 1]} : vector<8x238xf32> to vector<8x236xf32>
    %141 = arith.truncf %140 : vector<8x236xf32> to vector<8x236xbf16>
    %c2_67 = arith.constant 2 : index
    %c0_68 = arith.constant 0 : index
    %c0_69 = arith.constant 0 : index
    %142 = vector.load %arg10[%c2_67, %c0_68, %c0_69] : memref<3x8x8xbf16, #tpu.memory_space<vmem>>, vector<1x8x8xbf16>
    %143 = vector.shape_cast %142 : vector<1x8x8xbf16> to vector<8x8xbf16>
    %cst_70 = arith.constant dense<0.000000e+00> : vector<8x236xf32>
    %144 = tpu.matmul %143, %141, %cst_70 {dimension_numbers = #tpu.dot_dimension_numbers<[1], [0], [0], [1], [0, 0, 1, 1], [], []>} : vector<8x8xbf16>, vector<8x236xbf16>, vector<8x236xf32> -> vector<8x236xf32>
    %145 = arith.addf %139, %144 : vector<8x236xf32>
    %c0_71 = arith.constant 0 : index
    %c0_72 = arith.constant 0 : index
    %146 = vector.load %arg11[%c0_71, %c0_72] : memref<8x1xf32, #tpu.memory_space<vmem>>, vector<8x1xf32>
    %147 = vector.broadcast %146 : vector<8x1xf32> to vector<8x236xf32>
    %148 = arith.addf %145, %147 : vector<8x236xf32>
    %c10_i32 = arith.constant 10 : i32
    %149 = arith.addi %1, %c10_i32 : i32
    %150 = vector.extract_strided_slice %2 {offsets = [0, 0], sizes = [1, 236], strides = [1, 1]} : vector<1x256xi32> to vector<1x236xi32>
    %151 = vector.broadcast %149 : i32 to vector<1x236xi32>
    %152 = arith.addi %151, %150 : vector<1x236xi32>
    %c0_i32_73 = arith.constant 0 : i32
    %153 = vector.broadcast %c0_i32_73 : i32 to vector<1x236xi32>
    %154 = arith.cmpi sge, %152, %153 : vector<1x236xi32>
    %c256_i32_74 = arith.constant 256 : i32
    %155 = vector.broadcast %c256_i32_74 : i32 to vector<1x236xi32>
    %156 = arith.cmpi slt, %152, %155 : vector<1x236xi32>
    %157 = arith.andi %154, %156 : vector<1x236xi1>
    %cst_75 = arith.constant 0.000000e+00 : f32
    %158 = vector.shape_cast %157 : vector<1x236xi1> to vector<1x236xi1>
    %159 = vector.broadcast %158 : vector<1x236xi1> to vector<8x236xi1>
    %160 = vector.broadcast %cst_75 : f32 to vector<8x236xf32>
    %161 = arith.select %159, %148, %160 : vector<8x236xi1>, vector<8x236xf32>
    %162 = vector.extract_strided_slice %85 {offsets = [0, 6], sizes = [8, 236], strides = [1, 1]} : vector<8x248xf32> to vector<8x236xf32>
    %163 = arith.addf %161, %162 : vector<8x236xf32>
    %164 = vector.extract_strided_slice %163 {offsets = [0, 54], sizes = [8, 128], strides = [1, 1]} : vector<8x236xf32> to vector<8x128xf32>
    %c0_76 = arith.constant 0 : index
    %c0_77 = arith.constant 0 : index
    %c0_78 = arith.constant 0 : index
    %165 = vector.load %arg12[%c0_76, %c0_77, %c0_78] : memref<1x8x128xf32, #tpu.memory_space<vmem>>, vector<1x8x128xf32>
    %166 = vector.shape_cast %165 : vector<1x8x128xf32> to vector<8x128xf32>
    %167 = vector.shape_cast %164 : vector<8x128xf32> to vector<1x8x128xf32>
    tpu.vector_store %arg12[%c0_76, %c0_77, %c0_78], %167 {strides = array<i32>} : memref<1x8x128xf32, #tpu.memory_space<vmem>>, vector<1x8x128xf32>,
    return
  }
  func.func @transform_0(%arg0: i32, %arg1: i32) -> (i32, i32, i32) {
    %c0_i32 = arith.constant 0 : i32
    %c0_i32_0 = arith.constant 0 : i32
    return %arg0, %c0_i32, %arg1 : i32, i32, i32
  }
  func.func @transform_1(%arg0: i32, %arg1: i32) -> (i32, i32, i32) {
    %c1_i32 = arith.constant 1 : i32
    %0 = arith.addi %arg1, %c1_i32 : i32
    %c1_i32_0 = arith.constant 1 : i32
    %1 = arith.muli %0, %c1_i32_0 : i32
    %c0_i32 = arith.constant 0 : i32
    %c0_i32_1 = arith.constant 0 : i32
    return %arg0, %c0_i32, %1 : i32, i32, i32
  }
  func.func @transform_2(%arg0: i32, %arg1: i32) -> (i32, i32, i32) {
    %c0_i32 = arith.constant 0 : i32
    %c0_i32_0 = arith.constant 0 : i32
    %c0_i32_1 = arith.constant 0 : i32
    %c0_i32_2 = arith.constant 0 : i32
    return %c0_i32, %c0_i32_0, %c0_i32_1 : i32, i32, i32
  }
  func.func @transform_3(%arg0: i32, %arg1: i32) -> (i32, i32) {
    %c0_i32 = arith.constant 0 : i32
    %c0_i32_0 = arith.constant 0 : i32
    %c0_i32_1 = arith.constant 0 : i32
    return %c0_i32, %c0_i32_0 : i32, i32
  }
  func.func @transform_4(%arg0: i32, %arg1: i32) -> (i32, i32, i32) {
    %c0_i32 = arith.constant 0 : i32
    %c0_i32_0 = arith.constant 0 : i32
    %c0_i32_1 = arith.constant 0 : i32
    %c0_i32_2 = arith.constant 0 : i32
    return %c0_i32, %c0_i32_0, %c0_i32_1 : i32, i32, i32
  }
  func.func @transform_5(%arg0: i32, %arg1: i32) -> (i32, i32) {
    %c0_i32 = arith.constant 0 : i32
    %c0_i32_0 = arith.constant 0 : i32
    %c0_i32_1 = arith.constant 0 : i32
    return %c0_i32, %c0_i32_0 : i32, i32
  }
  func.func @transform_6(%arg0: i32, %arg1: i32) -> (i32, i32, i32) {
    %c0_i32 = arith.constant 0 : i32
    %c0_i32_0 = arith.constant 0 : i32
    %c0_i32_1 = arith.constant 0 : i32
    %c0_i32_2 = arith.constant 0 : i32
    return %c0_i32, %c0_i32_0, %c0_i32_1 : i32, i32, i32
  }
  func.func @transform_7(%arg0: i32, %arg1: i32) -> (i32, i32) {
    %c0_i32 = arith.constant 0 : i32
    %c0_i32_0 = arith.constant 0 : i32
    %c0_i32_1 = arith.constant 0 : i32
    return %c0_i32, %c0_i32_0 : i32, i32
  }
  func.func @transform_8(%arg0: i32, %arg1: i32) -> (i32, i32, i32) {
    %c0_i32 = arith.constant 0 : i32
    %c0_i32_0 = arith.constant 0 : i32
    %c0_i32_1 = arith.constant 0 : i32
    %c0_i32_2 = arith.constant 0 : i32
    return %c0_i32, %c0_i32_0, %c0_i32_1 : i32, i32, i32
  }
  func.func @transform_9(%arg0: i32, %arg1: i32) -> (i32, i32) {
    %c0_i32 = arith.constant 0 : i32
    %c0_i32_0 = arith.constant 0 : i32
    %c0_i32_1 = arith.constant 0 : i32
    return %c0_i32, %c0_i32_0 : i32, i32
  }
  func.func @transform_10(%arg0: i32, %arg1: i32) -> (i32, i32, i32) {
    %c0_i32 = arith.constant 0 : i32
    %c0_i32_0 = arith.constant 0 : i32
    return %arg0, %c0_i32, %arg1 : i32, i32, i32
  }
}

</mosaic_0001>

<llo_original>
// kernel: res_block_forward.1
$region0: #{res_block_forward.1}
  #allocation0 [shape = 'u32[]', space=smem, size = 0x4, offset = 0x4, fixed_abs, tag = 'smem constant byte address 0x4 - core index']
  #allocation1 [shape = 'u32[144,128]{1,0:T(1,128)}', space=vmem, size = 0x12000, scoped, tag = 'internal scratch']
  %s0 = inlined_call_operand.vmem [shape: f32[2,8,384], index: 0, kind: input, shape index: {}, may-alias: {0,1}]
  %s1 = inlined_call_operand.vmem [shape: f32[2,8,384], index: 1, kind: input, shape index: {}, may-alias: {0,1}]
  %s2 = inlined_call_operand.vmem [shape: bf16[3,8,8], index: 2, kind: input, shape index: {}]
  %s3 = inlined_call_operand.vmem [shape: f32[8,1], index: 3, kind: input, shape index: {}]
  %s4 = inlined_call_operand.vmem [shape: bf16[3,8,8], index: 4, kind: input, shape index: {}]
  %s5 = inlined_call_operand.vmem [shape: f32[8,1], index: 5, kind: input, shape index: {}]
  %s6 = inlined_call_operand.vmem [shape: bf16[3,8,8], index: 6, kind: input, shape index: {}]
  %s7 = inlined_call_operand.vmem [shape: f32[8,1], index: 7, kind: input, shape index: {}]
  %s8 = inlined_call_operand.vmem [shape: bf16[3,8,8], index: 8, kind: input, shape index: {}]
  %s9 = inlined_call_operand.vmem [shape: f32[8,1], index: 9, kind: input, shape index: {}]
  %s10 = inlined_call_operand.hbm [shape: f32[2,8,256], index: 10, kind: output, shape index: {}]
  %s11 = sld [smem:[#allocation0]]
  $region73: #{res_block_forward.1} parent=0
    _
  %s13 = ssub.s32 1, %s11
  %s14 = scalar_select 0, %s13, %s11
  $region1: #{res_block_forward.1} parent=0
    #allocation2 [shape = 'u8[8192]{0}', space=vmem, size = 0x2000, scoped, tag = 'output window, operand 0']
    #allocation3 [shape = 's32[2]{0}', space=sflag, size = 0x8, scoped, tag = 'scoped memory for res_block_forward.1']
    %15 = vsyncpa [#allocation3], 0
    %s16 = scalar_lea.sflag [#allocation3], 1
    %17 = vsyncpa %s16, 0
    loop: start=0, step=1, limit=6
    $region2: #{res_block_forward.1} parent=1 // loop_pre_header
      _
    $region3: #{res_block_forward.1} parent=1 // loop_header
      %s19 = sphi 0, %s23
      %p20 = scmp.ge.s32.totalorder %s19, 6
      %s26 = sphi 0, %s38
      %s27 = sphi 0, %s34
      %s28 = sphi 0, %s26
      %s29 = sphi 0, %s27
      %s30 = sphi 0, %s28
      %s31 = sphi 0, %s29
      %s43 = sphi 0, %s45
      %s46 = sphi 0, %s43
      %s47 = sphi 0, %s46
      %s63 = sphi 0, %s47
      %s73 = sphi 0, %s75
      %s76 = sphi 0, %s73
      %s77 = sphi 0, %s76
      %s93 = sphi 0, %s77
      %s97 = sphi 0, %s97
      %s99 = sphi 0, %s97
      %s100 = sphi 0, %s99
      %s114 = sphi 0, %s100
      %s118 = sphi 0, %s118
      %s120 = sphi 0, %s118
      %s121 = sphi 0, %s120
      %s135 = sphi 0, %s121
      %s139 = sphi 0, %s139
      %s141 = sphi 0, %s139
      %s142 = sphi 0, %s141
      %s156 = sphi 0, %s142
      %s160 = sphi 0, %s160
      %s162 = sphi 0, %s160
      %s163 = sphi 0, %s162
      %s177 = sphi 0, %s163
      %s181 = sphi 0, %s181
      %s183 = sphi 0, %s181
      %s184 = sphi 0, %s183
      %s198 = sphi 0, %s184
      %s202 = sphi 0, %s202
      %s204 = sphi 0, %s202
      %s205 = sphi 0, %s204
      %s219 = sphi 0, %s205
      %s223 = sphi 0, %s223
      %s225 = sphi 0, %s223
      %s226 = sphi 0, %s225
      %s240 = sphi 0, %s226
      %s244 = sphi 0, %s244
      %s246 = sphi 0, %s244
      %s247 = sphi 0, %s246
      %s261 = sphi 0, %s247
      %s269 = sphi 0, %s271
      %s272 = sphi 0, %s269
      %s273 = sphi 0, %s272
      %s289 = sphi 0, %s273
    $region4: #{res_block_forward.1} parent=1 // loop_header_branch
      %22 = sbr.rel (%p20) target = $region8
    $region5: #{res_block_forward.1} parent=1 // loop_body
      %s24 = ssub.s32 %s19, 1
      %s25 = ssub.s32 %s19, 2
      %s32 = sadd.s32 1, %s27
      %p33 = scmp.ge.s32.totalorder %s32, 2
      %s34 = scalar_select %p33, 0, %s32
      %s35 = sadd.s32 1, %s26
      %s36 = scalar_select %p33, %s35, %s26
      %p37 = scmp.ge.s32.totalorder %s36, 2
      %s38 = scalar_select %p37, 0, %s36
      %s39 = ssub.s32 %s26, %s38
      %s40 = ssub.s32 %s27, %s34
      %s41 = sor.u32 %s39, %s40
      %p42 = scmp.eq.s32.totalorder %s41, 0
      %s44 = sadd.s32 %s43, 1
      %s45 = scalar_select %p42, %s43, %s44
      %p48 = pneg %p42
      %p49 = scmp.eq.s32.totalorder %s19, 3
      %p50 = por %p48, %p49
      %p51 = scmp.ne.s32.totalorder %s43, %s46
      %p52 = scmp.eq.s32.totalorder %s19, 0
      %p53 = por %p51, %p52
      %p54 = scmp.ne.s32.totalorder %s43, %s46
      %p55 = scmp.eq.s32.totalorder %s24, 3
      %p56 = por %p54, %p55
      %p57 = scmp.ne.s32.totalorder %s46, %s47
      %p58 = scmp.eq.s32.totalorder %s24, 0
      %p59 = por %p57, %p58
      %p60 = scmp.ne.s32.totalorder %s46, %s47
      %p61 = scmp.eq.s32.totalorder %s25, 3
      %p62 = por %p60, %p61
      %p64 = scmp.ne.s32.totalorder %s47, %s63
      %p65 = scmp.eq.s32.totalorder %s25, 0
      %p66 = por %p64, %p65
      %s67 = sadd.s32 %s27, 1
      %s68 = sadd.s32 %s34, 1
      %s69 = ssub.s32 %s26, %s38
      %s70 = ssub.s32 %s67, %s68
      %s71 = sor.u32 %s69, %s70
      %p72 = scmp.eq.s32.totalorder %s71, 0
      %s74 = sadd.s32 %s73, 1
      %s75 = scalar_select %p72, %s73, %s74
      %p78 = pneg %p72
      %p79 = scmp.eq.s32.totalorder %s19, 3
      %p80 = por %p78, %p79
      %p81 = scmp.ne.s32.totalorder %s73, %s76
      %p82 = scmp.eq.s32.totalorder %s19, 0
      %p83 = por %p81, %p82
      %p84 = scmp.ne.s32.totalorder %s73, %s76
      %p85 = scmp.eq.s32.totalorder %s24, 3
      %p86 = por %p84, %p85
      %p87 = scmp.ne.s32.totalorder %s76, %s77
      %p88 = scmp.eq.s32.totalorder %s24, 0
      %p89 = por %p87, %p88
      %p90 = scmp.ne.s32.totalorder %s76, %s77
      %p91 = scmp.eq.s32.totalorder %s25, 3
      %p92 = por %p90, %p91
      %p94 = scmp.ne.s32.totalorder %s77, %s93
      %p95 = scmp.eq.s32.totalorder %s25, 0
      %p96 = por %p94, %p95
      %s98 = sadd.s32 %s97, 1
      %p101 = scmp.eq.s32.totalorder %s19, 3
      %p102 = scmp.ne.s32.totalorder %s97, %s99
      %p103 = scmp.eq.s32.totalorder %s19, 0
      %p104 = por %p102, %p103
      %p105 = scmp.ne.s32.totalorder %s97, %s99
      %p106 = scmp.eq.s32.totalorder %s24, 3
      %p107 = por %p105, %p106
      %p108 = scmp.ne.s32.totalorder %s99, %s100
      %p109 = scmp.eq.s32.totalorder %s24, 0
      %p110 = por %p108, %p109
      %p111 = scmp.ne.s32.totalorder %s99, %s100
      %p112 = scmp.eq.s32.totalorder %s25, 3
      %p113 = por %p111, %p112
      %p115 = scmp.ne.s32.totalorder %s100, %s114
      %p116 = scmp.eq.s32.totalorder %s25, 0
      %p117 = por %p115, %p116
      %s119 = sadd.s32 %s118, 1
      %p122 = scmp.eq.s32.totalorder %s19, 3
      %p123 = scmp.ne.s32.totalorder %s118, %s120
      %p124 = scmp.eq.s32.totalorder %s19, 0
      %p125 = por %p123, %p124
      %p126 = scmp.ne.s32.totalorder %s118, %s120
      %p127 = scmp.eq.s32.totalorder %s24, 3
      %p128 = por %p126, %p127
      %p129 = scmp.ne.s32.totalorder %s120, %s121
      %p130 = scmp.eq.s32.totalorder %s24, 0
      %p131 = por %p129, %p130
      %p132 = scmp.ne.s32.totalorder %s120, %s121
      %p133 = scmp.eq.s32.totalorder %s25, 3
      %p134 = por %p132, %p133
      %p136 = scmp.ne.s32.totalorder %s121, %s135
      %p137 = scmp.eq.s32.totalorder %s25, 0
      %p138 = por %p136, %p137
      %s140 = sadd.s32 %s139, 1
      %p143 = scmp.eq.s32.totalorder %s19, 3
      %p144 = scmp.ne.s32.totalorder %s139, %s141
      %p145 = scmp.eq.s32.totalorder %s19, 0
      %p146 = por %p144, %p145
      %p147 = scmp.ne.s32.totalorder %s139, %s141
      %p148 = scmp.eq.s32.totalorder %s24, 3
      %p149 = por %p147, %p148
      %p150 = scmp.ne.s32.totalorder %s141, %s142
      %p151 = scmp.eq.s32.totalorder %s24, 0
      %p152 = por %p150, %p151
      %p153 = scmp.ne.s32.totalorder %s141, %s142
      %p154 = scmp.eq.s32.totalorder %s25, 3
      %p155 = por %p153, %p154
      %p157 = scmp.ne.s32.totalorder %s142, %s156
      %p158 = scmp.eq.s32.totalorder %s25, 0
      %p159 = por %p157, %p158
      %s161 = sadd.s32 %s160, 1
      %p164 = scmp.eq.s32.totalorder %s19, 3
      %p165 = scmp.ne.s32.totalorder %s160, %s162
      %p166 = scmp.eq.s32.totalorder %s19, 0
      %p167 = por %p165, %p166
      %p168 = scmp.ne.s32.totalorder %s160, %s162
      %p169 = scmp.eq.s32.totalorder %s24, 3
      %p170 = por %p168, %p169
      %p171 = scmp.ne.s32.totalorder %s162, %s163
      %p172 = scmp.eq.s32.totalorder %s24, 0
      %p173 = por %p171, %p172
      %p174 = scmp.ne.s32.totalorder %s162, %s163
      %p175 = scmp.eq.s32.totalorder %s25, 3
      %p176 = por %p174, %p175
      %p178 = scmp.ne.s32.totalorder %s163, %s177
      %p179 = scmp.eq.s32.totalorder %s25, 0
      %p180 = por %p178, %p179
      %s182 = sadd.s32 %s181, 1
      %p185 = scmp.eq.s32.totalorder %s19, 3
      %p186 = scmp.ne.s32.totalorder %s181, %s183
      %p187 = scmp.eq.s32.totalorder %s19, 0
      %p188 = por %p186, %p187
      %p189 = scmp.ne.s32.totalorder %s181, %s183
      %p190 = scmp.eq.s32.totalorder %s24, 3
      %p191 = por %p189, %p190
      %p192 = scmp.ne.s32.totalorder %s183, %s184
      %p193 = scmp.eq.s32.totalorder %s24, 0
      %p194 = por %p192, %p193
      %p195 = scmp.ne.s32.totalorder %s183, %s184
      %p196 = scmp.eq.s32.totalorder %s25, 3
      %p197 = por %p195, %p196
      %p199 = scmp.ne.s32.totalorder %s184, %s198
      %p200 = scmp.eq.s32.totalorder %s25, 0
      %p201 = por %p199, %p200
      %s203 = sadd.s32 %s202, 1
      %p206 = scmp.eq.s32.totalorder %s19, 3
      %p207 = scmp.ne.s32.totalorder %s202, %s204
      %p208 = scmp.eq.s32.totalorder %s19, 0
      %p209 = por %p207, %p208
      %p210 = scmp.ne.s32.totalorder %s202, %s204
      %p211 = scmp.eq.s32.totalorder %s24, 3
      %p212 = por %p210, %p211
      %p213 = scmp.ne.s32.totalorder %s204, %s205
      %p214 = scmp.eq.s32.totalorder %s24, 0
      %p215 = por %p213, %p214
      %p216 = scmp.ne.s32.totalorder %s204, %s205
      %p217 = scmp.eq.s32.totalorder %s25, 3
      %p218 = por %p216, %p217
      %p220 = scmp.ne.s32.totalorder %s205, %s219
      %p221 = scmp.eq.s32.totalorder %s25, 0
      %p222 = por %p220, %p221
      %s224 = sadd.s32 %s223, 1
      %p227 = scmp.eq.s32.totalorder %s19, 3
      %p228 = scmp.ne.s32.totalorder %s223, %s225
      %p229 = scmp.eq.s32.totalorder %s19, 0
      %p230 = por %p228, %p229
      %p231 = scmp.ne.s32.totalorder %s223, %s225
      %p232 = scmp.eq.s32.totalorder %s24, 3
      %p233 = por %p231, %p232
      %p234 = scmp.ne.s32.totalorder %s225, %s226
      %p235 = scmp.eq.s32.totalorder %s24, 0
      %p236 = por %p234, %p235
      %p237 = scmp.ne.s32.totalorder %s225, %s226
      %p238 = scmp.eq.s32.totalorder %s25, 3
      %p239 = por %p237, %p238
      %p241 = scmp.ne.s32.totalorder %s226, %s240
      %p242 = scmp.eq.s32.totalorder %s25, 0
      %p243 = por %p241, %p242
      %s245 = sadd.s32 %s244, 1
      %p248 = scmp.eq.s32.totalorder %s19, 3
      %p249 = scmp.ne.s32.totalorder %s244, %s246
      %p250 = scmp.eq.s32.totalorder %s19, 0
      %p251 = por %p249, %p250
      %p252 = scmp.ne.s32.totalorder %s244, %s246
      %p253 = scmp.eq.s32.totalorder %s24, 3
      %p254 = por %p252, %p253
      %p255 = scmp.ne.s32.totalorder %s246, %s247
      %p256 = scmp.eq.s32.totalorder %s24, 0
      %p257 = por %p255, %p256
      %p258 = scmp.ne.s32.totalorder %s246, %s247
      %p259 = scmp.eq.s32.totalorder %s25, 3
      %p260 = por %p258, %p259
      %p262 = scmp.ne.s32.totalorder %s247, %s261
      %p263 = scmp.eq.s32.totalorder %s25, 0
      %p264 = por %p262, %p263
      %s265 = ssub.s32 %s26, %s38
      %s266 = ssub.s32 %s27, %s34
      %s267 = sor.u32 %s265, %s266
      %p268 = scmp.eq.s32.totalorder %s267, 0
      %s270 = sadd.s32 %s269, 1
      %s271 = scalar_select %p268, %s269, %s270
      %p274 = pneg %p268
      %p275 = scmp.eq.s32.totalorder %s19, 3
      %p276 = por %p274, %p275
      %p277 = scmp.ne.s32.totalorder %s269, %s272
      %p278 = scmp.eq.s32.totalorder %s19, 0
      %p279 = por %p277, %p278
      %p280 = scmp.ne.s32.totalorder %s269, %s272
      %p281 = scmp.eq.s32.totalorder %s24, 3
      %p282 = por %p280, %p281
      %p283 = scmp.ne.s32.totalorder %s272, %s273
      %p284 = scmp.eq.s32.totalorder %s24, 0
      %p285 = por %p283, %p284
      %p286 = scmp.ne.s32.totalorder %s272, %s273
      %p287 = scmp.eq.s32.totalorder %s25, 3
      %p288 = por %p286, %p287
      %p290 = scmp.ne.s32.totalorder %s273, %s289
      %p291 = scmp.eq.s32.totalorder %s25, 0
      %p292 = por %p290, %p291
      %p293 = scmp.le.s32.totalorder 1, %s19
      %p294 = scmp.lt.s32.totalorder %s19, 5
      %p295 = pnand %p293, %p294
      %p296 = pneg %p295
      // Predicated region
      $region9: #{res_block_forward.1} parent=5 // pred_check
        _
      $region10: #{res_block_forward.1} parent=5 // pred_check_branch
        %298 = sbr.rel (%p295) target = $region12
      $region11: #{res_block_forward.1} parent=5 // pred_region
        %s299 = ssub.s32 %s19, 1
        // Predicated region
        $region13: #{res_block_forward.1} parent=11 // pred_check
          %p300 = pneg %p110
        $region14: #{res_block_forward.1} parent=11 // pred_check_branch
          %302 = sbr.rel (%p300) target = $region16
        $region15: #{res_block_forward.1} parent=11 // pred_region
          _
        $region16: #{res_block_forward.1} parent=11 // pred_fallthru
          _
        // Predicated region
        $region17: #{res_block_forward.1} parent=11 // pred_check
          %p303 = pneg %p131
        $region18: #{res_block_forward.1} parent=11 // pred_check_branch
          %305 = sbr.rel (%p303) target = $region20
        $region19: #{res_block_forward.1} parent=11 // pred_region
          _
        $region20: #{res_block_forward.1} parent=11 // pred_fallthru
          _
        // Predicated region
        $region21: #{res_block_forward.1} parent=11 // pred_check
          %p306 = pneg %p152
        $region22: #{res_block_forward.1} parent=11 // pred_check_branch
          %308 = sbr.rel (%p306) target = $region24
        $region23: #{res_block_forward.1} parent=11 // pred_region
          _
        $region24: #{res_block_forward.1} parent=11 // pred_fallthru
          _
        // Predicated region
        $region25: #{res_block_forward.1} parent=11 // pred_check
          %p309 = pneg %p173
        $region26: #{res_block_forward.1} parent=11 // pred_check_branch
          %311 = sbr.rel (%p309) target = $region28
        $region27: #{res_block_forward.1} parent=11 // pred_region
          _
        $region28: #{res_block_forward.1} parent=11 // pred_fallthru
          _
        // Predicated region
        $region29: #{res_block_forward.1} parent=11 // pred_check
          %p312 = pneg %p194
        $region30: #{res_block_forward.1} parent=11 // pred_check_branch
          %314 = sbr.rel (%p312) target = $region32
        $region31: #{res_block_forward.1} parent=11 // pred_region
          _
        $region32: #{res_block_forward.1} parent=11 // pred_fallthru
          _
        // Predicated region
        $region33: #{res_block_forward.1} parent=11 // pred_check
          %p315 = pneg %p215
        $region34: #{res_block_forward.1} parent=11 // pred_check_branch
          %317 = sbr.rel (%p315) target = $region36
        $region35: #{res_block_forward.1} parent=11 // pred_region
          _
        $region36: #{res_block_forward.1} parent=11 // pred_fallthru
          _
        // Predicated region
        $region37: #{res_block_forward.1} parent=11 // pred_check
          %p318 = pneg %p236
        $region38: #{res_block_forward.1} parent=11 // pred_check_branch
          %320 = sbr.rel (%p318) target = $region40
        $region39: #{res_block_forward.1} parent=11 // pred_region
          _
        $region40: #{res_block_forward.1} parent=11 // pred_fallthru
          _
        // Predicated region
        $region41: #{res_block_forward.1} parent=11 // pred_check
          %p321 = pneg %p257
        $region42: #{res_block_forward.1} parent=11 // pred_check_branch
          %323 = sbr.rel (%p321) target = $region44
        $region43: #{res_block_forward.1} parent=11 // pred_region
          _
        $region44: #{res_block_forward.1} parent=11 // pred_fallthru
          _
      $region12: #{res_block_forward.1} parent=5 // pred_fallthru
        _
      %p324 = scmp.lt.s32.totalorder %s19, 4
      // Predicated region
      $region45: #{res_block_forward.1} parent=5 // pred_check
        %p325 = pneg %p324
      $region46: #{res_block_forward.1} parent=5 // pred_check_branch
        %327 = sbr.rel (%p325) target = $region48
      $region47: #{res_block_forward.1} parent=5 // pred_region
        // Predicated region
        $region49: #{res_block_forward.1} parent=47 // pred_check
          %p328 = pneg %p53
        $region50: #{res_block_forward.1} parent=47 // pred_check_branch
          %330 = sbr.rel (%p328) target = $region52
        $region51: #{res_block_forward.1} parent=47 // pred_region
          %p331 = scmp.lt.s32.totalorder %s26, 1
          %s332 = scalar_select %p331, %s26, 1
          %p333 = scmp.lt.s32.totalorder %s27, 2
          %s334 = scalar_select %p333, %s27, 2
          %s335 = smul.addr %s332, 3
          %s336 = sadd.s32 %s334, %s335
          %s337 = smul.addr %s336, 8
          %s338 = scalar_lea.vmem %s0, %s337
        $region52: #{res_block_forward.1} parent=47 // pred_fallthru
          _
        // Predicated region
        $region53: #{res_block_forward.1} parent=47 // pred_check
          %p339 = pneg %p83
        $region54: #{res_block_forward.1} parent=47 // pred_check_branch
          %341 = sbr.rel (%p339) target = $region56
        $region55: #{res_block_forward.1} parent=47 // pred_region
          %s342 = sadd.s32 %s27, 1
          %p343 = scmp.lt.s32.totalorder %s26, 1
          %s344 = scalar_select %p343, %s26, 1
          %p345 = scmp.lt.s32.totalorder %s342, 2
          %s346 = scalar_select %p345, %s342, 2
          %s347 = smul.addr %s344, 3
          %s348 = sadd.s32 %s346, %s347
          %s349 = smul.addr %s348, 8
          %s350 = scalar_lea.vmem %s1, %s349
          %s351 = sadd.s32 %s27, 1
        $region56: #{res_block_forward.1} parent=47 // pred_fallthru
          _
      $region48: #{res_block_forward.1} parent=5 // pred_fallthru
        _
      %p352 = scmp.le.s32.totalorder 1, %s19
      %p353 = scmp.lt.s32.totalorder %s19, 5
      %p354 = pnand %p352, %p353
      %p355 = pneg %p354
      // Predicated region
      $region57: #{res_block_forward.1} parent=5 // pred_check
        _
      $region58: #{res_block_forward.1} parent=5 // pred_check_branch
        %357 = sbr.rel (%p354) target = $region60
      $region59: #{res_block_forward.1} parent=5 // pred_region
        %s358 = ssub.s32 %s19, 1
        %p359 = scmp.lt.s32.totalorder %s28, 1
        %s360 = scalar_select %p359, %s28, 1
        %p361 = scmp.lt.s32.totalorder %s29, 2
        %s362 = scalar_select %p361, %s29, 2
        %s363 = smul.addr %s360, 3
        %s364 = sadd.s32 %s362, %s363
        %s365 = smul.addr %s364, 8
        %s366 = scalar_lea.vmem %s0, %s365
        %p367 = pneg %p59
        %p368 = pneg %p56
        %s369 = sadd.s32 %s29, 1
        %p370 = scmp.lt.s32.totalorder %s28, 1
        %s371 = scalar_select %p370, %s28, 1
        %p372 = scmp.lt.s32.totalorder %s369, 2
        %s373 = scalar_select %p372, %s369, 2
        %s374 = smul.addr %s371, 3
        %s375 = sadd.s32 %s373, %s374
        %s376 = smul.addr %s375, 8
        %s377 = scalar_lea.vmem %s1, %s376
        %p378 = pneg %p89
        %p379 = pneg %p86
        %p380 = pneg %p110
        %p381 = pneg %p107
        %p382 = pneg %p131
        %p383 = pneg %p128
        %p384 = pneg %p152
        %p385 = pneg %p149
        %p386 = pneg %p173
        %p387 = pneg %p170
        %p388 = pneg %p194
        %p389 = pneg %p191
        %p390 = pneg %p215
        %p391 = pneg %p212
        %p392 = pneg %p236
        %p393 = pneg %p233
        %p394 = pneg %p257
        %p395 = pneg %p254
        %p396 = pneg %p285
        %p397 = pneg %p282
        %s398 = sand.u32 %s272, 1
        %s399 = scalar_lea.sflag [#allocation3], %s398
        %s400 = sand.u32 %s272, 1
        %s401 = smul.addr %s400, 8
        %s402 = scalar_lea.vmem [#allocation2], %s401
        %p403 = scmp.lt.s32.totalorder %s28, 1
        %s404 = scalar_select %p403, %s28, 1
        %p405 = scmp.lt.s32.totalorder %s29, 2
        %s406 = scalar_select %p405, %s29, 2
        %s407 = smul.addr %s404, 3
        %s408 = sadd.s32 %s406, %s407
        %s409 = smul.addr %s408, 8
        %s410 = scalar_lea.vmem %s0, %s409
        %s411 = sadd.s32 %s29, 1
        %p412 = scmp.lt.s32.totalorder %s28, 1
        %s413 = scalar_select %p412, %s28, 1
        %p414 = scmp.lt.s32.totalorder %s411, 2
        %s415 = scalar_select %p414, %s411, 2
        %s416 = smul.addr %s413, 3
        %s417 = sadd.s32 %s415, %s416
        %s418 = smul.addr %s417, 8
        %s419 = scalar_lea.vmem %s1, %s418
        %s420 = sadd.s32 %s29, 1
        %s422 = smul.u32 %s29, 128
        %v423 = vlaneseq
        %v424 = vand.u32 %v423, 127
        %v425 = vadd.s32 %v424, 128
        %v426 = vld [vmem:[%s410] sm:$0xff]
        %v427 = vld [vmem:[%s419] sm:$0xff]
        %vm428 = vcmp.ge.f32.partialorder %v426, 0.0
        %vm429 = vcmp.ge.f32.partialorder %v427, 0.0
        %v430 = vmul.f32 %v426, 0.1
        %v431 = vmul.f32 %v427, 0.1
        %v432 = vsel %vm428, %v426, %v430
        %v433 = vsel %vm429, %v427, %v431
        %v434 = vpack.c.bf16 %v432, %v432
        %v435 = vpack.c.bf16 %v433, %v433
        %v436 = vld [vmem:[%s2] sm:$0xf]
        %s437 = scalar_lea.vmem %s2, 4
        %v438 = vld [vmem:[%s437] sm:$0xf]
        %441 = vrot.lane.b32.xlu0 %v434, 127
        %v442 = vpop.permute.xlu0 %441
        %443 = vrot.lane.b32.xlu0 %v435, 127
        %v444 = vpop.permute.xlu0 %443
        %vm445 = vcmask 1039360
        %v446 = vsel %vm445, %v442, %v444
        %vm447 = vcmask 64512
        %v449 = vsel %vm447, %v438, 0
        %vm451 = vcmask 1043456
        %v453 = vsel %vm451, %v446, 0
        %v456 = vsel %vm451, %v444, 0
        %458 = vmatprep.subr.bf16.mxu0 %v456
        %459 = vmatpush1.bf16.msra.mxu0 %v453
        %460 = vmatprep.subr.bf16.mxu0 0
        %461 = vmatpush1.bf16.msra.mxu0 0
        %462 = vmatprep.subr.bf16.mxu0 0
        %463 = vmatpush1.bf16.msra.mxu0 0
        %464 = vmatprep.subr.bf16.mxu0 0
        %465 = vmatpush1.bf16.msra.mxu0 0
        %466 = vmatprep.subr.bf16.mxu0 0
        %467 = vmatpush1.bf16.msra.mxu0 0
        %468 = vmatprep.subr.bf16.mxu0 0
        %469 = vmatpush1.bf16.msra.mxu0 0
        %470 = vmatprep.subr.bf16.mxu0 0
        %471 = vmatpush1.bf16.msra.mxu0 0
        %472 = vmatprep.subr.bf16.mxu0 0
        %473 = vmatpush1.bf16.msra.mxu0 0
        %474 = vmatprep.subr.bf16.mxu0 0
        %475 = vmatpush1.bf16.msra.mxu0 0
        %476 = vmatprep.subr.bf16.mxu0 0
        %477 = vmatpush1.bf16.msra.mxu0 0
        %478 = vmatprep.subr.bf16.mxu0 0
        %479 = vmatpush1.bf16.msra.mxu0 0
        %480 = vmatprep.subr.bf16.mxu0 0
        %481 = vmatpush1.bf16.msra.mxu0 0
        %482 = vmatprep.subr.bf16.mxu0 0
        %483 = vmatpush1.bf16.msra.mxu0 0
        %484 = vmatprep.subr.bf16.mxu0 0
        %485 = vmatpush1.bf16.msra.mxu0 0
        %486 = vmatprep.subr.bf16.mxu0 0
        %487 = vmatpush1.bf16.msra.mxu0 0
        %488 = vmatprep.subr.bf16.mxu0 0
        %489 = vmatpush1.bf16.msra.mxu0 0
        %490 = vmatprep.mubr.bf16.mxu0 0
        %491 = vmatmul.mubr.bf16.gmra.mrb[0].mxu0 %v449
        %v492 = vpop.f32.mrb[0].mxu0
        %v493 = vadd.f32 0.0, %v492
        %v494 = vpop.f32.mrb[0].mxu0
        %v495 = vadd.f32 0.0, %v494
        %v496 = vpop.f32.mrb[0].mxu0
        %v497 = vpop.f32.mrb[0].mxu0
        %498 = vdwg.mxu0
        %v500 = vsel %vm447, %v436, 0
        %v503 = vsel %vm451, %v434, 0
        %v506 = vsel %vm451, %v435, 0
        %508 = vmatprep.subr.bf16.mxu0 %v506
        %509 = vmatpush1.bf16.msra.mxu0 %v503
        %510 = vmatprep.subr.bf16.mxu0 0
        %511 = vmatpush1.bf16.msra.mxu0 0
        %512 = vmatprep.subr.bf16.mxu0 0
        %513 = vmatpush1.bf16.msra.mxu0 0
        %514 = vmatprep.subr.bf16.mxu0 0
        %515 = vmatpush1.bf16.msra.mxu0 0
        %516 = vmatprep.subr.bf16.mxu0 0
        %517 = vmatpush1.bf16.msra.mxu0 0
        %518 = vmatprep.subr.bf16.mxu0 0
        %519 = vmatpush1.bf16.msra.mxu0 0
        %520 = vmatprep.subr.bf16.mxu0 0
        %521 = vmatpush1.bf16.msra.mxu0 0
        %522 = vmatprep.subr.bf16.mxu0 0
        %523 = vmatpush1.bf16.msra.mxu0 0
        %524 = vmatprep.subr.bf16.mxu0 0
        %525 = vmatpush1.bf16.msra.mxu0 0
        %526 = vmatprep.subr.bf16.mxu0 0
        %527 = vmatpush1.bf16.msra.mxu0 0
        %528 = vmatprep.subr.bf16.mxu0 0
        %529 = vmatpush1.bf16.msra.mxu0 0
        %530 = vmatprep.subr.bf16.mxu0 0
        %531 = vmatpush1.bf16.msra.mxu0 0
        %532 = vmatprep.subr.bf16.mxu0 0
        %533 = vmatpush1.bf16.msra.mxu0 0
        %534 = vmatprep.subr.bf16.mxu0 0
        %535 = vmatpush1.bf16.msra.mxu0 0
        %536 = vmatprep.subr.bf16.mxu0 0
        %537 = vmatpush1.bf16.msra.mxu0 0
        %538 = vmatprep.subr.bf16.mxu0 0
        %539 = vmatpush1.bf16.msra.mxu0 0
        %540 = vmatprep.mubr.bf16.mxu0 0
        %541 = vmatmul.mubr.bf16.gmra.mrb[0].mxu0 %v500
        %v542 = vpop.f32.mrb[0].mxu0
        %v543 = vadd.f32 %v493, %v542
        %v544 = vpop.f32.mrb[0].mxu0
        %v545 = vadd.f32 %v495, %v544
        %v546 = vpop.f32.mrb[0].mxu0
        %v547 = vpop.f32.mrb[0].mxu0
        %548 = vdwg.mxu0
        %s549 = scalar_lea.vmem %s2, 8
        %v550 = vld [vmem:[%s549] sm:$0xf]
        %551 = vrot.lane.b32.xlu0 %v434, 126
        %v552 = vpop.permute.xlu0 %551
        %553 = vrot.lane.b32.xlu0 %v435, 126
        %v554 = vpop.permute.xlu0 %553
        %vm555 = vcmask 1031168
        %v556 = vsel %vm555, %v552, %v554
        %v558 = vsel %vm447, %v550, 0
        %v561 = vsel %vm451, %v556, 0
        %v564 = vsel %vm451, %v554, 0
        %566 = vmatprep.subr.bf16.mxu0 %v564
        %567 = vmatpush1.bf16.msra.mxu0 %v561
        %568 = vmatprep.subr.bf16.mxu0 0
        %569 = vmatpush1.bf16.msra.mxu0 0
        %570 = vmatprep.subr.bf16.mxu0 0
        %571 = vmatpush1.bf16.msra.mxu0 0
        %572 = vmatprep.subr.bf16.mxu0 0
        %573 = vmatpush1.bf16.msra.mxu0 0
        %574 = vmatprep.subr.bf16.mxu0 0
        %575 = vmatpush1.bf16.msra.mxu0 0
        %576 = vmatprep.subr.bf16.mxu0 0
        %577 = vmatpush1.bf16.msra.mxu0 0
        %578 = vmatprep.subr.bf16.mxu0 0
        %579 = vmatpush1.bf16.msra.mxu0 0
        %580 = vmatprep.subr.bf16.mxu0 0
        %581 = vmatpush1.bf16.msra.mxu0 0
        %582 = vmatprep.subr.bf16.mxu0 0
        %583 = vmatpush1.bf16.msra.mxu0 0
        %584 = vmatprep.subr.bf16.mxu0 0
        %585 = vmatpush1.bf16.msra.mxu0 0
        %586 = vmatprep.subr.bf16.mxu0 0
        %587 = vmatpush1.bf16.msra.mxu0 0
        %588 = vmatprep.subr.bf16.mxu0 0
        %589 = vmatpush1.bf16.msra.mxu0 0
        %590 = vmatprep.subr.bf16.mxu0 0
        %591 = vmatpush1.bf16.msra.mxu0 0
        %592 = vmatprep.subr.bf16.mxu0 0
        %593 = vmatpush1.bf16.msra.mxu0 0
        %594 = vmatprep.subr.bf16.mxu0 0
        %595 = vmatpush1.bf16.msra.mxu0 0
        %596 = vmatprep.subr.bf16.mxu0 0
        %597 = vmatpush1.bf16.msra.mxu0 0
        %598 = vmatprep.mubr.bf16.mxu0 0
        %599 = vmatmul.mubr.bf16.gmra.mrb[0].mxu0 %v558
        %v600 = vpop.f32.mrb[0].mxu0
        %v601 = vadd.f32 0.0, %v600
        %v602 = vpop.f32.mrb[0].mxu0
        %v603 = vadd.f32 0.0, %v602
        %v604 = vpop.f32.mrb[0].mxu0
        %v605 = vpop.f32.mrb[0].mxu0
        %606 = vdwg.mxu0
        %v607 = vadd.f32 %v543, %v601
        %v608 = vadd.f32 %v545, %v603
        %v609 = vld [vmem:[%s3] sm:$0xff]
        %611 = vset.pattern.permute.xlu0 0
        %612 = vperm.xlu0 %611, %v609
        %v613 = vpop.permute.xlu0 %612
        %v615 = vadd.f32 %v607, %v613
        %v616 = vadd.f32 %v608, %v613
        %s617 = sadd.s32 %s422, 4294967233
        %v618 = vstv %s617
        %v619 = vadd.s32 %v618, %v424
        %v620 = vadd.s32 %v618, %v425
        %vm621 = vcmp.ge.s32.totalorder %v619, 0
        %vm622 = vcmp.ge.s32.totalorder %v620, 0
        %vm623 = vcmp.lt.s32.totalorder %v619, 256
        %vm624 = vcmp.lt.s32.totalorder %v620, 256
        %vm625 = vmand %vm621, %vm623
        %vm626 = vmand %vm622, %vm624
        %v627 = vsel %vm625, 1, 0
        %v628 = vsel %vm626, 1, 0
        %vm629 = vcmp.eq.s32.totalorder %v627, 1
        %vm630 = vcmp.eq.s32.totalorder %v628, 1
        %v631 = vsel %vm629, %v615, 0.0
        %v632 = vsel %vm630, %v616, 0.0
        %vm633 = vcmp.ge.f32.partialorder %v631, 0.0
        %vm634 = vcmp.ge.f32.partialorder %v632, 0.0
        %v635 = vmul.f32 %v631, 0.1
        %v636 = vmul.f32 %v632, 0.1
        %v637 = vsel %vm633, %v631, %v635
        %v638 = vsel %vm634, %v632, %v636
        %v639 = vpack.c.bf16 %v637, %v637
        %v640 = vpack.c.bf16 %v638, %v638
        %v641 = vld [vmem:[%s4] sm:$0xf]
        %s642 = scalar_lea.vmem %s4, 4
        %v643 = vld [vmem:[%s642] sm:$0xf]
        %646 = vrot.lane.b32.xlu0 %v639, 125
        %v647 = vpop.permute.xlu0 %646
        %648 = vrot.lane.b32.xlu0 %v640, 125
        %v649 = vpop.permute.xlu0 %648
        %vm650 = vcmask 1022976
        %v651 = vsel %vm650, %v647, %v649
        %v653 = vsel %vm447, %v643, 0
        %v656 = vsel %vm451, %v651, 0
        %v659 = vsel %vm451, %v649, 0
        %661 = vmatprep.subr.bf16.mxu0 %v659
        %662 = vmatpush1.bf16.msra.mxu0 %v656
        %663 = vmatprep.subr.bf16.mxu0 0
        %664 = vmatpush1.bf16.msra.mxu0 0
        %665 = vmatprep.subr.bf16.mxu0 0
        %666 = vmatpush1.bf16.msra.mxu0 0
        %667 = vmatprep.subr.bf16.mxu0 0
        %668 = vmatpush1.bf16.msra.mxu0 0
        %669 = vmatprep.subr.bf16.mxu0 0
        %670 = vmatpush1.bf16.msra.mxu0 0
        %671 = vmatprep.subr.bf16.mxu0 0
        %672 = vmatpush1.bf16.msra.mxu0 0
        %673 = vmatprep.subr.bf16.mxu0 0
        %674 = vmatpush1.bf16.msra.mxu0 0
        %675 = vmatprep.subr.bf16.mxu0 0
        %676 = vmatpush1.bf16.msra.mxu0 0
        %677 = vmatprep.subr.bf16.mxu0 0
        %678 = vmatpush1.bf16.msra.mxu0 0
        %679 = vmatprep.subr.bf16.mxu0 0
        %680 = vmatpush1.bf16.msra.mxu0 0
        %681 = vmatprep.subr.bf16.mxu0 0
        %682 = vmatpush1.bf16.msra.mxu0 0
        %683 = vmatprep.subr.bf16.mxu0 0
        %684 = vmatpush1.bf16.msra.mxu0 0
        %685 = vmatprep.subr.bf16.mxu0 0
        %686 = vmatpush1.bf16.msra.mxu0 0
        %687 = vmatprep.subr.bf16.mxu0 0
        %688 = vmatpush1.bf16.msra.mxu0 0
        %689 = vmatprep.subr.bf16.mxu0 0
        %690 = vmatpush1.bf16.msra.mxu0 0
        %691 = vmatprep.subr.bf16.mxu0 0
        %692 = vmatpush1.bf16.msra.mxu0 0
        %693 = vmatprep.mubr.bf16.mxu0 0
        %694 = vmatmul.mubr.bf16.gmra.mrb[0].mxu0 %v653
        %v695 = vpop.f32.mrb[0].mxu0
        %v696 = vadd.f32 0.0, %v695
        %v697 = vpop.f32.mrb[0].mxu0
        %v698 = vadd.f32 0.0, %v697
        %v699 = vpop.f32.mrb[0].mxu0
        %v700 = vpop.f32.mrb[0].mxu0
        %701 = vdwg.mxu0
        %v703 = vsel %vm447, %v641, 0
        %v706 = vsel %vm451, %v639, 0
        %v709 = vsel %vm451, %v640, 0
        %711 = vmatprep.subr.bf16.mxu0 %v709
        %712 = vmatpush1.bf16.msra.mxu0 %v706
        %713 = vmatprep.subr.bf16.mxu0 0
        %714 = vmatpush1.bf16.msra.mxu0 0
        %715 = vmatprep.subr.bf16.mxu0 0
        %716 = vmatpush1.bf16.msra.mxu0 0
        %717 = vmatprep.subr.bf16.mxu0 0
        %718 = vmatpush1.bf16.msra.mxu0 0
        %719 = vmatprep.subr.bf16.mxu0 0
        %720 = vmatpush1.bf16.msra.mxu0 0
        %721 = vmatprep.subr.bf16.mxu0 0
        %722 = vmatpush1.bf16.msra.mxu0 0
        %723 = vmatprep.subr.bf16.mxu0 0
        %724 = vmatpush1.bf16.msra.mxu0 0
        %725 = vmatprep.subr.bf16.mxu0 0
        %726 = vmatpush1.bf16.msra.mxu0 0
        %727 = vmatprep.subr.bf16.mxu0 0
        %728 = vmatpush1.bf16.msra.mxu0 0
        %729 = vmatprep.subr.bf16.mxu0 0
        %730 = vmatpush1.bf16.msra.mxu0 0
        %731 = vmatprep.subr.bf16.mxu0 0
        %732 = vmatpush1.bf16.msra.mxu0 0
        %733 = vmatprep.subr.bf16.mxu0 0
        %734 = vmatpush1.bf16.msra.mxu0 0
        %735 = vmatprep.subr.bf16.mxu0 0
        %736 = vmatpush1.bf16.msra.mxu0 0
        %737 = vmatprep.subr.bf16.mxu0 0
        %738 = vmatpush1.bf16.msra.mxu0 0
        %739 = vmatprep.subr.bf16.mxu0 0
        %740 = vmatpush1.bf16.msra.mxu0 0
        %741 = vmatprep.subr.bf16.mxu0 0
        %742 = vmatpush1.bf16.msra.mxu0 0
        %743 = vmatprep.mubr.bf16.mxu0 0
        %744 = vmatmul.mubr.bf16.gmra.mrb[0].mxu0 %v703
        %v745 = vpop.f32.mrb[0].mxu0
        %v746 = vadd.f32 %v696, %v745
        %v747 = vpop.f32.mrb[0].mxu0
        %v748 = vadd.f32 %v698, %v747
        %v749 = vpop.f32.mrb[0].mxu0
        %v750 = vpop.f32.mrb[0].mxu0
        %751 = vdwg.mxu0
        %s752 = scalar_lea.vmem %s4, 8
        %v753 = vld [vmem:[%s752] sm:$0xf]
        %754 = vrot.lane.b32.xlu0 %v639, 122
        %v755 = vpop.permute.xlu0 %754
        %756 = vrot.lane.b32.xlu0 %v640, 122
        %v757 = vpop.permute.xlu0 %756
        %vm758 = vcmask 998400
        %v759 = vsel %vm758, %v755, %v757
        %v761 = vsel %vm447, %v753, 0
        %v764 = vsel %vm451, %v759, 0
        %v767 = vsel %vm451, %v757, 0
        %769 = vmatprep.subr.bf16.mxu0 %v767
        %770 = vmatpush1.bf16.msra.mxu0 %v764
        %771 = vmatprep.subr.bf16.mxu0 0
        %772 = vmatpush1.bf16.msra.mxu0 0
        %773 = vmatprep.subr.bf16.mxu0 0
        %774 = vmatpush1.bf16.msra.mxu0 0
        %775 = vmatprep.subr.bf16.mxu0 0
        %776 = vmatpush1.bf16.msra.mxu0 0
        %777 = vmatprep.subr.bf16.mxu0 0
        %778 = vmatpush1.bf16.msra.mxu0 0
        %779 = vmatprep.subr.bf16.mxu0 0
        %780 = vmatpush1.bf16.msra.mxu0 0
        %781 = vmatprep.subr.bf16.mxu0 0
        %782 = vmatpush1.bf16.msra.mxu0 0
        %783 = vmatprep.subr.bf16.mxu0 0
        %784 = vmatpush1.bf16.msra.mxu0 0
        %785 = vmatprep.subr.bf16.mxu0 0
        %786 = vmatpush1.bf16.msra.mxu0 0
        %787 = vmatprep.subr.bf16.mxu0 0
        %788 = vmatpush1.bf16.msra.mxu0 0
        %789 = vmatprep.subr.bf16.mxu0 0
        %790 = vmatpush1.bf16.msra.mxu0 0
        %791 = vmatprep.subr.bf16.mxu0 0
        %792 = vmatpush1.bf16.msra.mxu0 0
        %793 = vmatprep.subr.bf16.mxu0 0
        %794 = vmatpush1.bf16.msra.mxu0 0
        %795 = vmatprep.subr.bf16.mxu0 0
        %796 = vmatpush1.bf16.msra.mxu0 0
        %797 = vmatprep.subr.bf16.mxu0 0
        %798 = vmatpush1.bf16.msra.mxu0 0
        %799 = vmatprep.subr.bf16.mxu0 0
        %800 = vmatpush1.bf16.msra.mxu0 0
        %801 = vmatprep.mubr.bf16.mxu0 0
        %802 = vmatmul.mubr.bf16.gmra.mrb[0].mxu0 %v761
        %v803 = vpop.f32.mrb[0].mxu0
        %v804 = vadd.f32 0.0, %v803
        %v805 = vpop.f32.mrb[0].mxu0
        %v806 = vadd.f32 0.0, %v805
        %v807 = vpop.f32.mrb[0].mxu0
        %v808 = vpop.f32.mrb[0].mxu0
        %809 = vdwg.mxu0
        %v810 = vadd.f32 %v746, %v804
        %v811 = vadd.f32 %v748, %v806
        %v812 = vld [vmem:[%s5] sm:$0xff]
        %814 = vset.pattern.permute.xlu0 0
        %815 = vperm.xlu0 %814, %v812
        %v816 = vpop.permute.xlu0 %815
        %v818 = vadd.f32 %v810, %v816
        %v819 = vadd.f32 %v811, %v816
        %s820 = sadd.s32 %s422, 4294967236
        %v821 = vstv %s820
        %v822 = vadd.s32 %v821, %v424
        %v823 = vadd.s32 %v821, %v425
        %vm824 = vcmp.ge.s32.totalorder %v822, 0
        %vm825 = vcmp.ge.s32.totalorder %v823, 0
        %vm826 = vcmp.lt.s32.totalorder %v822, 256
        %vm827 = vcmp.lt.s32.totalorder %v823, 256
        %vm828 = vmand %vm824, %vm826
        %vm829 = vmand %vm825, %vm827
        %v830 = vsel %vm828, 1, 0
        %v831 = vsel %vm829, 1, 0
        %vm832 = vcmp.eq.s32.totalorder %v830, 1
        %vm833 = vcmp.eq.s32.totalorder %v831, 1
        %v834 = vsel %vm832, %v818, 0.0
        %v835 = vsel %vm833, %v819, 0.0
        %838 = vrot.lane.b32.xlu0 %v426, 124
        %v839 = vpop.permute.xlu0 %838
        %840 = vrot.lane.b32.xlu0 %v427, 124
        %v841 = vpop.permute.xlu0 %840
        %vm842 = vcmask 1014784
        %v843 = vsel %vm842, %v839, %v841
        %v846 = vadd.f32 %v834, %v843
        %v847 = vadd.f32 %v835, %v841
        %vm848 = vcmp.ge.f32.partialorder %v846, 0.0
        %vm849 = vcmp.ge.f32.partialorder %v847, 0.0
        %v850 = vmul.f32 %v846, 0.1
        %v851 = vmul.f32 %v847, 0.1
        %v852 = vsel %vm848, %v846, %v850
        %v853 = vsel %vm849, %v847, %v851
        %v854 = vpack.c.bf16 %v852, %v852
        %v855 = vpack.c.bf16 %v853, %v853
        %v856 = vld [vmem:[%s6] sm:$0xf]
        %s857 = scalar_lea.vmem %s6, 4
        %v858 = vld [vmem:[%s857] sm:$0xf]
        %861 = vrot.lane.b32.xlu0 %v854, 123
        %v862 = vpop.permute.xlu0 %861
        %863 = vrot.lane.b32.xlu0 %v855, 123
        %v864 = vpop.permute.xlu0 %863
        %vm865 = vcmask 1006592
        %v866 = vsel %vm865, %v862, %v864
        %v868 = vsel %vm447, %v858, 0
        %v871 = vsel %vm451, %v866, 0
        %v874 = vsel %vm451, %v864, 0
        %876 = vmatprep.subr.bf16.mxu0 %v874
        %877 = vmatpush1.bf16.msra.mxu0 %v871
        %878 = vmatprep.subr.bf16.mxu0 0
        %879 = vmatpush1.bf16.msra.mxu0 0
        %880 = vmatprep.subr.bf16.mxu0 0
        %881 = vmatpush1.bf16.msra.mxu0 0
        %882 = vmatprep.subr.bf16.mxu0 0
        %883 = vmatpush1.bf16.msra.mxu0 0
        %884 = vmatprep.subr.bf16.mxu0 0
        %885 = vmatpush1.bf16.msra.mxu0 0
        %886 = vmatprep.subr.bf16.mxu0 0
        %887 = vmatpush1.bf16.msra.mxu0 0
        %888 = vmatprep.subr.bf16.mxu0 0
        %889 = vmatpush1.bf16.msra.mxu0 0
        %890 = vmatprep.subr.bf16.mxu0 0
        %891 = vmatpush1.bf16.msra.mxu0 0
        %892 = vmatprep.subr.bf16.mxu0 0
        %893 = vmatpush1.bf16.msra.mxu0 0
        %894 = vmatprep.subr.bf16.mxu0 0
        %895 = vmatpush1.bf16.msra.mxu0 0
        %896 = vmatprep.subr.bf16.mxu0 0
        %897 = vmatpush1.bf16.msra.mxu0 0
        %898 = vmatprep.subr.bf16.mxu0 0
        %899 = vmatpush1.bf16.msra.mxu0 0
        %900 = vmatprep.subr.bf16.mxu0 0
        %901 = vmatpush1.bf16.msra.mxu0 0
        %902 = vmatprep.subr.bf16.mxu0 0
        %903 = vmatpush1.bf16.msra.mxu0 0
        %904 = vmatprep.subr.bf16.mxu0 0
        %905 = vmatpush1.bf16.msra.mxu0 0
        %906 = vmatprep.subr.bf16.mxu0 0
        %907 = vmatpush1.bf16.msra.mxu0 0
        %908 = vmatprep.mubr.bf16.mxu0 0
        %909 = vmatmul.mubr.bf16.gmra.mrb[0].mxu0 %v868
        %v910 = vpop.f32.mrb[0].mxu0
        %v911 = vadd.f32 0.0, %v910
        %v912 = vpop.f32.mrb[0].mxu0
        %v913 = vadd.f32 0.0, %v912
        %v914 = vpop.f32.mrb[0].mxu0
        %v915 = vpop.f32.mrb[0].mxu0
        %916 = vdwg.mxu0
        %v918 = vsel %vm447, %v856, 0
        %v921 = vsel %vm451, %v854, 0
        %v924 = vsel %vm451, %v855, 0
        %926 = vmatprep.subr.bf16.mxu0 %v924
        %927 = vmatpush1.bf16.msra.mxu0 %v921
        %928 = vmatprep.subr.bf16.mxu0 0
        %929 = vmatpush1.bf16.msra.mxu0 0
        %930 = vmatprep.subr.bf16.mxu0 0
        %931 = vmatpush1.bf16.msra.mxu0 0
        %932 = vmatprep.subr.bf16.mxu0 0
        %933 = vmatpush1.bf16.msra.mxu0 0
        %934 = vmatprep.subr.bf16.mxu0 0
        %935 = vmatpush1.bf16.msra.mxu0 0
        %936 = vmatprep.subr.bf16.mxu0 0
        %937 = vmatpush1.bf16.msra.mxu0 0
        %938 = vmatprep.subr.bf16.mxu0 0
        %939 = vmatpush1.bf16.msra.mxu0 0
        %940 = vmatprep.subr.bf16.mxu0 0
        %941 = vmatpush1.bf16.msra.mxu0 0
        %942 = vmatprep.subr.bf16.mxu0 0
        %943 = vmatpush1.bf16.msra.mxu0 0
        %944 = vmatprep.subr.bf16.mxu0 0
        %945 = vmatpush1.bf16.msra.mxu0 0
        %946 = vmatprep.subr.bf16.mxu0 0
        %947 = vmatpush1.bf16.msra.mxu0 0
        %948 = vmatprep.subr.bf16.mxu0 0
        %949 = vmatpush1.bf16.msra.mxu0 0
        %950 = vmatprep.subr.bf16.mxu0 0
        %951 = vmatpush1.bf16.msra.mxu0 0
        %952 = vmatprep.subr.bf16.mxu0 0
        %953 = vmatpush1.bf16.msra.mxu0 0
        %954 = vmatprep.subr.bf16.mxu0 0
        %955 = vmatpush1.bf16.msra.mxu0 0
        %956 = vmatprep.subr.bf16.mxu0 0
        %957 = vmatpush1.bf16.msra.mxu0 0
        %958 = vmatprep.mubr.bf16.mxu0 0
        %959 = vmatmul.mubr.bf16.gmra.mrb[0].mxu0 %v918
        %v960 = vpop.f32.mrb[0].mxu0
        %v961 = vadd.f32 %v911, %v960
        %v962 = vpop.f32.mrb[0].mxu0
        %v963 = vadd.f32 %v913, %v962
        %v964 = vpop.f32.mrb[0].mxu0
        %v965 = vpop.f32.mrb[0].mxu0
        %966 = vdwg.mxu0
        %s967 = scalar_lea.vmem %s6, 8
        %v968 = vld [vmem:[%s967] sm:$0xf]
        %969 = vrot.lane.b32.xlu0 %v854, 118
        %v970 = vpop.permute.xlu0 %969
        %971 = vrot.lane.b32.xlu0 %v855, 118
        %v972 = vpop.permute.xlu0 %971
        %vm973 = vcmask 965632
        %v974 = vsel %vm973, %v970, %v972
        %v976 = vsel %vm447, %v968, 0
        %v979 = vsel %vm451, %v974, 0
        %v982 = vsel %vm451, %v972, 0
        %984 = vmatprep.subr.bf16.mxu0 %v982
        %985 = vmatpush1.bf16.msra.mxu0 %v979
        %986 = vmatprep.subr.bf16.mxu0 0
        %987 = vmatpush1.bf16.msra.mxu0 0
        %988 = vmatprep.subr.bf16.mxu0 0
        %989 = vmatpush1.bf16.msra.mxu0 0
        %990 = vmatprep.subr.bf16.mxu0 0
        %991 = vmatpush1.bf16.msra.mxu0 0
        %992 = vmatprep.subr.bf16.mxu0 0
        %993 = vmatpush1.bf16.msra.mxu0 0
        %994 = vmatprep.subr.bf16.mxu0 0
        %995 = vmatpush1.bf16.msra.mxu0 0
        %996 = vmatprep.subr.bf16.mxu0 0
        %997 = vmatpush1.bf16.msra.mxu0 0
        %998 = vmatprep.subr.bf16.mxu0 0
        %999 = vmatpush1.bf16.msra.mxu0 0
        %1000 = vmatprep.subr.bf16.mxu0 0
        %1001 = vmatpush1.bf16.msra.mxu0 0
        %1002 = vmatprep.subr.bf16.mxu0 0
        %1003 = vmatpush1.bf16.msra.mxu0 0
        %1004 = vmatprep.subr.bf16.mxu0 0
        %1005 = vmatpush1.bf16.msra.mxu0 0
        %1006 = vmatprep.subr.bf16.mxu0 0
        %1007 = vmatpush1.bf16.msra.mxu0 0
        %1008 = vmatprep.subr.bf16.mxu0 0
        %1009 = vmatpush1.bf16.msra.mxu0 0
        %1010 = vmatprep.subr.bf16.mxu0 0
        %1011 = vmatpush1.bf16.msra.mxu0 0
        %1012 = vmatprep.subr.bf16.mxu0 0
        %1013 = vmatpush1.bf16.msra.mxu0 0
        %1014 = vmatprep.subr.bf16.mxu0 0
        %1015 = vmatpush1.bf16.msra.mxu0 0
        %1016 = vmatprep.mubr.bf16.mxu0 0
        %1017 = vmatmul.mubr.bf16.gmra.mrb[0].mxu0 %v976
        %v1018 = vpop.f32.mrb[0].mxu0
        %v1019 = vadd.f32 0.0, %v1018
        %v1020 = vpop.f32.mrb[0].mxu0
        %v1021 = vadd.f32 0.0, %v1020
        %v1022 = vpop.f32.mrb[0].mxu0
        %v1023 = vpop.f32.mrb[0].mxu0
        %1024 = vdwg.mxu0
        %v1025 = vadd.f32 %v961, %v1019
        %v1026 = vadd.f32 %v963, %v1021
        %v1027 = vld [vmem:[%s7] sm:$0xff]
        %1029 = vset.pattern.permute.xlu0 0
        %1030 = vperm.xlu0 %1029, %v1027
        %v1031 = vpop.permute.xlu0 %1030
        %v1033 = vadd.f32 %v1025, %v1031
        %v1034 = vadd.f32 %v1026, %v1031
        %s1035 = sadd.s32 %s422, 4294967241
        %v1036 = vstv %s1035
        %v1037 = vadd.s32 %v1036, %v424
        %v1038 = vadd.s32 %v1036, %v425
        %vm1039 = vcmp.ge.s32.totalorder %v1037, 0
        %vm1040 = vcmp.ge.s32.totalorder %v1038, 0
        %vm1041 = vcmp.lt.s32.totalorder %v1037, 256
        %vm1042 = vcmp.lt.s32.totalorder %v1038, 256
        %vm1043 = vmand %vm1039, %vm1041
        %vm1044 = vmand %vm1040, %vm1042
        %v1045 = vsel %vm1043, 1, 0
        %v1046 = vsel %vm1044, 1, 0
        %vm1047 = vcmp.eq.s32.totalorder %v1045, 1
        %vm1048 = vcmp.eq.s32.totalorder %v1046, 1
        %v1049 = vsel %vm1047, %v1033, 0.0
        %v1050 = vsel %vm1048, %v1034, 0.0
        %vm1051 = vcmp.ge.f32.partialorder %v1049, 0.0
        %vm1052 = vcmp.ge.f32.partialorder %v1050, 0.0
        %v1053 = vmul.f32 %v1049, 0.1
        %v1054 = vmul.f32 %v1050, 0.1
        %v1055 = vsel %vm1051, %v1049, %v1053
        %v1056 = vsel %vm1052, %v1050, %v1054
        %v1057 = vpack.c.bf16 %v1055, %v1055
        %v1058 = vpack.c.bf16 %v1056, %v1056
        %v1059 = vld [vmem:[%s8] sm:$0xf]
        %s1060 = scalar_lea.vmem %s8, 4
        %v1061 = vld [vmem:[%s1060] sm:$0xf]
        %1064 = vrot.lane.b32.xlu0 %v1057, 127
        %v1065 = vpop.permute.xlu0 %1064
        %1066 = vrot.lane.b32.xlu0 %v1058, 127
        %v1067 = vpop.permute.xlu0 %1066
        %v1068 = vsel %vm445, %v1065, %v1067
        %v1070 = vsel %vm447, %v1061, 0
        %v1073 = vsel %vm451, %v1068, 0
        %v1076 = vsel %vm451, %v1067, 0
        %1078 = vmatprep.subr.bf16.mxu0 %v1076
        %1079 = vmatpush1.bf16.msra.mxu0 %v1073
        %1080 = vmatprep.subr.bf16.mxu0 0
        %1081 = vmatpush1.bf16.msra.mxu0 0
        %1082 = vmatprep.subr.bf16.mxu0 0
        %1083 = vmatpush1.bf16.msra.mxu0 0
        %1084 = vmatprep.subr.bf16.mxu0 0
        %1085 = vmatpush1.bf16.msra.mxu0 0
        %1086 = vmatprep.subr.bf16.mxu0 0
        %1087 = vmatpush1.bf16.msra.mxu0 0
        %1088 = vmatprep.subr.bf16.mxu0 0
        %1089 = vmatpush1.bf16.msra.mxu0 0
        %1090 = vmatprep.subr.bf16.mxu0 0
        %1091 = vmatpush1.bf16.msra.mxu0 0
        %1092 = vmatprep.subr.bf16.mxu0 0
        %1093 = vmatpush1.bf16.msra.mxu0 0
        %1094 = vmatprep.subr.bf16.mxu0 0
        %1095 = vmatpush1.bf16.msra.mxu0 0
        %1096 = vmatprep.subr.bf16.mxu0 0
        %1097 = vmatpush1.bf16.msra.mxu0 0
        %1098 = vmatprep.subr.bf16.mxu0 0
        %1099 = vmatpush1.bf16.msra.mxu0 0
        %1100 = vmatprep.subr.bf16.mxu0 0
        %1101 = vmatpush1.bf16.msra.mxu0 0
        %1102 = vmatprep.subr.bf16.mxu0 0
        %1103 = vmatpush1.bf16.msra.mxu0 0
        %1104 = vmatprep.subr.bf16.mxu0 0
        %1105 = vmatpush1.bf16.msra.mxu0 0
        %1106 = vmatprep.subr.bf16.mxu0 0
        %1107 = vmatpush1.bf16.msra.mxu0 0
        %1108 = vmatprep.subr.bf16.mxu0 0
        %1109 = vmatpush1.bf16.msra.mxu0 0
        %1110 = vmatprep.mubr.bf16.mxu0 0
        %1111 = vmatmul.mubr.bf16.gmra.mrb[0].mxu0 %v1070
        %v1112 = vpop.f32.mrb[0].mxu0
        %v1113 = vadd.f32 0.0, %v1112
        %v1114 = vpop.f32.mrb[0].mxu0
        %v1115 = vadd.f32 0.0, %v1114
        %v1116 = vpop.f32.mrb[0].mxu0
        %v1117 = vpop.f32.mrb[0].mxu0
        %1118 = vdwg.mxu0
        %v1120 = vsel %vm447, %v1059, 0
        %v1123 = vsel %vm451, %v1057, 0
        %v1126 = vsel %vm451, %v1058, 0
        %1128 = vmatprep.subr.bf16.mxu0 %v1126
        %1129 = vmatpush1.bf16.msra.mxu0 %v1123
        %1130 = vmatprep.subr.bf16.mxu0 0
        %1131 = vmatpush1.bf16.msra.mxu0 0
        %1132 = vmatprep.subr.bf16.mxu0 0
        %1133 = vmatpush1.bf16.msra.mxu0 0
        %1134 = vmatprep.subr.bf16.mxu0 0
        %1135 = vmatpush1.bf16.msra.mxu0 0
        %1136 = vmatprep.subr.bf16.mxu0 0
        %1137 = vmatpush1.bf16.msra.mxu0 0
        %1138 = vmatprep.subr.bf16.mxu0 0
        %1139 = vmatpush1.bf16.msra.mxu0 0
        %1140 = vmatprep.subr.bf16.mxu0 0
        %1141 = vmatpush1.bf16.msra.mxu0 0
        %1142 = vmatprep.subr.bf16.mxu0 0
        %1143 = vmatpush1.bf16.msra.mxu0 0
        %1144 = vmatprep.subr.bf16.mxu0 0
        %1145 = vmatpush1.bf16.msra.mxu0 0
        %1146 = vmatprep.subr.bf16.mxu0 0
        %1147 = vmatpush1.bf16.msra.mxu0 0
        %1148 = vmatprep.subr.bf16.mxu0 0
        %1149 = vmatpush1.bf16.msra.mxu0 0
        %1150 = vmatprep.subr.bf16.mxu0 0
        %1151 = vmatpush1.bf16.msra.mxu0 0
        %1152 = vmatprep.subr.bf16.mxu0 0
        %1153 = vmatpush1.bf16.msra.mxu0 0
        %1154 = vmatprep.subr.bf16.mxu0 0
        %1155 = vmatpush1.bf16.msra.mxu0 0
        %1156 = vmatprep.subr.bf16.mxu0 0
        %1157 = vmatpush1.bf16.msra.mxu0 0
        %1158 = vmatprep.subr.bf16.mxu0 0
        %1159 = vmatpush1.bf16.msra.mxu0 0
        %1160 = vmatprep.mubr.bf16.mxu0 0
        %1161 = vmatmul.mubr.bf16.gmra.mrb[0].mxu0 %v1120
        %v1162 = vpop.f32.mrb[0].mxu0
        %v1163 = vadd.f32 %v1113, %v1162
        %v1164 = vpop.f32.mrb[0].mxu0
        %v1165 = vadd.f32 %v1115, %v1164
        %v1166 = vpop.f32.mrb[0].mxu0
        %v1167 = vpop.f32.mrb[0].mxu0
        %1168 = vdwg.mxu0
        %s1169 = scalar_lea.vmem %s8, 8
        %v1170 = vld [vmem:[%s1169] sm:$0xf]
        %1171 = vrot.lane.b32.xlu0 %v1057, 126
        %v1172 = vpop.permute.xlu0 %1171
        %1173 = vrot.lane.b32.xlu0 %v1058, 126
        %v1174 = vpop.permute.xlu0 %1173
        %v1175 = vsel %vm555, %v1172, %v1174
        %v1177 = vsel %vm447, %v1170, 0
        %v1180 = vsel %vm451, %v1175, 0
        %v1183 = vsel %vm451, %v1174, 0
        %1185 = vmatprep.subr.bf16.mxu0 %v1183
        %1186 = vmatpush1.bf16.msra.mxu0 %v1180
        %1187 = vmatprep.subr.bf16.mxu0 0
        %1188 = vmatpush1.bf16.msra.mxu0 0
        %1189 = vmatprep.subr.bf16.mxu0 0
        %1190 = vmatpush1.bf16.msra.mxu0 0
        %1191 = vmatprep.subr.bf16.mxu0 0
        %1192 = vmatpush1.bf16.msra.mxu0 0
        %1193 = vmatprep.subr.bf16.mxu0 0
        %1194 = vmatpush1.bf16.msra.mxu0 0
        %1195 = vmatprep.subr.bf16.mxu0 0
        %1196 = vmatpush1.bf16.msra.mxu0 0
        %1197 = vmatprep.subr.bf16.mxu0 0
        %1198 = vmatpush1.bf16.msra.mxu0 0
        %1199 = vmatprep.subr.bf16.mxu0 0
        %1200 = vmatpush1.bf16.msra.mxu0 0
        %1201 = vmatprep.subr.bf16.mxu0 0
        %1202 = vmatpush1.bf16.msra.mxu0 0
        %1203 = vmatprep.subr.bf16.mxu0 0
        %1204 = vmatpush1.bf16.msra.mxu0 0
        %1205 = vmatprep.subr.bf16.mxu0 0
        %1206 = vmatpush1.bf16.msra.mxu0 0
        %1207 = vmatprep.subr.bf16.mxu0 0
        %1208 = vmatpush1.bf16.msra.mxu0 0
        %1209 = vmatprep.subr.bf16.mxu0 0
        %1210 = vmatpush1.bf16.msra.mxu0 0
        %1211 = vmatprep.subr.bf16.mxu0 0
        %1212 = vmatpush1.bf16.msra.mxu0 0
        %1213 = vmatprep.subr.bf16.mxu0 0
        %1214 = vmatpush1.bf16.msra.mxu0 0
        %1215 = vmatprep.subr.bf16.mxu0 0
        %1216 = vmatpush1.bf16.msra.mxu0 0
        %1217 = vmatprep.mubr.bf16.mxu0 0
        %1218 = vmatmul.mubr.bf16.gmra.mrb[0].mxu0 %v1177
        %v1219 = vpop.f32.mrb[0].mxu0
        %v1220 = vadd.f32 0.0, %v1219
        %v1221 = vpop.f32.mrb[0].mxu0
        %v1222 = vadd.f32 0.0, %v1221
        %v1223 = vpop.f32.mrb[0].mxu0
        %v1224 = vpop.f32.mrb[0].mxu0
        %1225 = vdwg.mxu0
        %v1226 = vadd.f32 %v1163, %v1220
        %v1227 = vadd.f32 %v1165, %v1222
        %v1228 = vld [vmem:[%s9] sm:$0xff]
        %1230 = vset.pattern.permute.xlu0 0
        %1231 = vperm.xlu0 %1230, %v1228
        %v1232 = vpop.permute.xlu0 %1231
        %v1234 = vadd.f32 %v1226, %v1232
        %v1235 = vadd.f32 %v1227, %v1232
        %s1236 = sadd.s32 %s422, 4294967242
        %v1237 = vstv %s1236
        %v1238 = vadd.s32 %v1237, %v424
        %v1239 = vadd.s32 %v1237, %v425
        %vm1240 = vcmp.ge.s32.totalorder %v1238, 0
        %vm1241 = vcmp.ge.s32.totalorder %v1239, 0
        %vm1242 = vcmp.lt.s32.totalorder %v1238, 256
        %vm1243 = vcmp.lt.s32.totalorder %v1239, 256
        %vm1244 = vmand %vm1240, %vm1242
        %vm1245 = vmand %vm1241, %vm1243
        %v1246 = vsel %vm1244, 1, 0
        %v1247 = vsel %vm1245, 1, 0
        %vm1248 = vcmp.eq.s32.totalorder %v1246, 1
        %vm1249 = vcmp.eq.s32.totalorder %v1247, 1
        %v1250 = vsel %vm1248, %v1234, 0.0
        %v1251 = vsel %vm1249, %v1235, 0.0
        %1254 = vrot.lane.b32.xlu0 %v846, 122
        %v1255 = vpop.permute.xlu0 %1254
        %1256 = vrot.lane.b32.xlu0 %v847, 122
        %v1257 = vpop.permute.xlu0 %1256
        %vm1258 = vcmask 998400
        %v1259 = vsel %vm1258, %v1255, %v1257
        %v1262 = vadd.f32 %v1250, %v1259
        %v1263 = vadd.f32 %v1251, %v1257
        %1266 = vrot.lane.b32.xlu0 %v1262, 74
        %v1267 = vpop.permute.xlu0 %1266
        %1268 = vrot.lane.b32.xlu0 %v1263, 74
        %v1269 = vpop.permute.xlu0 %1268
        %vm1270 = vcmask 605184
        %v1271 = vsel %vm1270, %v1267, %v1269
        %1273 = vst [vmem:[%s402] sm:$0xff] %v1271
        %s1274 = sand.u32 %s272, 1
        %s1275 = scalar_lea.sflag [#allocation3], %s1274
        %s1276 = sand.u32 %s272, 1
        %s1277 = smul.addr %s1276, 8
        %s1278 = scalar_lea.vmem [#allocation2], %s1277
        // Predicated region
        $region61: #{res_block_forward.1} parent=59 // pred_check
          %p1279 = pneg %p282
        $region62: #{res_block_forward.1} parent=59 // pred_check_branch
          %1281 = sbr.rel (%p1279) target = $region64
        $region63: #{res_block_forward.1} parent=59 // pred_region
          %s1283 = ssub.s32 128, 128
          %1284 = vsyncadd %s1275, %s1283
          %s1285 = smul.addr %s28, 2
          %s1286 = sadd.s32 %s29, %s1285
          %s1287 = smul.addr %s1286, 128
          %s1288 = scalar_lea.hbm %s10, %s1287
          %s1290 = sshll.u32 %s1278, 4
          %s1291 = int_to_ptr.vmem [resolvable:$true] %s1290
          %1293 = dma.vmem_to_hbm [thread:$0]  %s1291, 128, %s1288, %s1275
        $region64: #{res_block_forward.1} parent=59 // pred_fallthru
          _
      $region60: #{res_block_forward.1} parent=5 // pred_fallthru
        _
      %p1294 = scmp.le.s32.totalorder 2, %s19
      // Predicated region
      $region65: #{res_block_forward.1} parent=5 // pred_check
        %p1295 = pneg %p1294
      $region66: #{res_block_forward.1} parent=5 // pred_check_branch
        %1297 = sbr.rel (%p1295) target = $region68
      $region67: #{res_block_forward.1} parent=5 // pred_region
        %s1298 = ssub.s32 %s19, 2
        // Predicated region
        $region69: #{res_block_forward.1} parent=67 // pred_check
          %p1299 = pneg %p288
        $region70: #{res_block_forward.1} parent=67 // pred_check_branch
          %1301 = sbr.rel (%p1299) target = $region72
        $region71: #{res_block_forward.1} parent=67 // pred_region
          %s1302 = sand.u32 %s273, 1
          %s1303 = scalar_lea.sflag [#allocation3], %s1302
          %s1304 = sand.u32 %s273, 1
          %s1305 = smul.addr %s1304, 8
          %s1306 = scalar_lea.vmem [#allocation2], %s1305
          %1307 = dma.done %s1303, 128
        $region72: #{res_block_forward.1} parent=67 // pred_fallthru
          _
      $region68: #{res_block_forward.1} parent=5 // pred_fallthru
        _
    $region6: #{res_block_forward.1} parent=1 // loop_footer
      %s23 = sadd.s32 1, %s19
    $region7: #{res_block_forward.1} parent=1 // loop_footer_branch
      %18 = sbr.rel target = $region3
    $region8: #{res_block_forward.1} parent=1 // loop_exit
      _
    %1308 = vsyncpa [#allocation3], 1
    %s1309 = scalar_lea.sflag [#allocation3], 1
    %1310 = vsyncpa %s1309, 1

</llo_original>
